<compile_context>
chip_gen: v6e
topology: v6e:2x2x1
jax: 0.10.0
libtpu: 0.0.40
codegen_flags: <defaults>
</compile_context>

<pallas_src>
import functools

import numpy as np
import jax
import jax.numpy as jnp
from jax.experimental import pallas as pl
from jax.experimental.pallas import tpu as pltpu

_LANE = 128      # feature dims padded to a multiple of this
_SUBLANE = 8     # batch padded to a multiple of this


def _round_up(n, m):
    return ((n + m - 1) // m) * m


# ---------------------------------------------------------------------------
# Stateless in-kernel Gaussian sampling (counter hash -> uniform -> inv-CDF).
# Pure jnp integer/float ops: lowers on Mosaic TPU and in interpret mode.
# ---------------------------------------------------------------------------
def _srl(x, n):
    """Logical right shift on int32 via arithmetic shift + mask (portable)."""
    mask = jnp.int32((1 << (32 - n)) - 1)
    return jnp.right_shift(x, n) & mask


def _fmix32(x):
    """murmur3 32-bit finalizer (bijective avalanche hash), int32 wraparound."""
    m1 = jnp.int32(-2048144789)   # 0x85EBCA6B
    m2 = jnp.int32(-1028477387)   # 0xC2B2AE35
    x = jnp.asarray(x, jnp.int32)
    x = x ^ _srl(x, 16)
    x = x * m1
    x = x ^ _srl(x, 13)
    x = x * m2
    x = x ^ _srl(x, 16)
    return x


def _uniform_01_from_bits(bits):
    """Uniform in [2^-24, 1 - 2^-24] from 23 low hash bits (log/sqrt stay finite)."""
    m = bits & jnp.int32(0x007FFFFF)
    return (m.astype(jnp.float32) + 0.5) * jnp.float32(1.0 / (1 << 23))


def _inv_norm_cdf(p):
    """Acklam's inverse-normal-CDF, symmetrized: central rational + ONE tail rational."""
    a1, a2, a3 = -3.969683028665376e+01, 2.209460984245205e+02, -2.759285104469687e+02
    a4, a5, a6 = 1.383577518672690e+02, -3.066479806614716e+01, 2.506628277459239e+00
    b1, b2, b3 = -5.447609879822406e+01, 1.615858368580409e+02, -1.556989798598866e+02
    b4, b5 = 6.680131188771972e+01, -1.328068155288572e+01
    c1, c2, c3 = -7.784894002430293e-03, -3.223964580411365e-01, -2.400758277161838e+00
    c4, c5, c6 = -2.549732539343734e+00, 4.374664141464968e+00, 2.938163982698783e+00
    d1, d2, d3, d4 = (7.784695709041462e-03, 3.224671290700398e-01,
                      2.445134137142996e+00, 3.754408661907416e+00)
    p_low = 0.02425

    # Central region (odd-symmetric about p = 0.5).
    q = p - 0.5
    r = q * q
    num_c = (((((a1 * r + a2) * r + a3) * r + a4) * r + a5) * r + a6) * q
    den_c = (((((b1 * r + b2) * r + b3) * r + b4) * r + b5) * r + 1.0)
    x_c = num_c / den_c

    # Single tail via symmetry x(p) = -x(1-p): evaluate the lower-tail form at
    # qm = min(p, 1-p) and sign-flip for the upper tail.
    qm = jnp.minimum(p, 1.0 - p)
    s = jnp.sqrt(-2.0 * jnp.log(qm))
    x_t = (((((c1 * s + c2) * s + c3) * s + c4) * s + c5) * s + c6) / \
          ((((d1 * s + d2) * s + d3) * s + d4) * s + 1.0)
    x_t = jnp.where(p > 0.5, -x_t, x_t)

    return jnp.where(qm < p_low, x_t, x_c)


def _hash_std_normal(shape, base):
    """N(0,1) sample of `shape`, keyed by per-element counter + traced scalar `base`."""
    rows = jax.lax.broadcasted_iota(jnp.int32, shape, 0)
    cols = jax.lax.broadcasted_iota(jnp.int32, shape, 1)
    idx = rows * jnp.int32(shape[1]) + cols + base
    return _inv_norm_cdf(_uniform_01_from_bits(_fmix32(idx)))


# ---------------------------------------------------------------------------
# Fused whole-MLP kernel: grid = (batch_tiles [parallel], layers [arbitrary]).
# ---------------------------------------------------------------------------
def _fused_vcl_kernel(seed_ref, x_ref, wmu_ref, wsig_ref, bmu_ref, bsig_ref,
                      o_ref, h_ref, *, eps_stride, dpad):
    l = pl.program_id(1)
    n_l = pl.num_programs(1)

    # Layer 0: load the input block into the VMEM activation carry.
    @pl.when(l == 0)
    def _():
        h_ref[...] = x_ref[...]

    # Per-(seed, layer, element) counters -> independent of the batch tile, so the
    # same W sample is used for every batch tile (torch: one sampled W per forward).
    key = _fmix32(seed_ref[0])
    base_w = key + l * jnp.int32(eps_stride)
    base_b = base_w + jnp.int32(dpad * dpad)

    eps_w = _hash_std_normal((dpad, dpad), base_w)
    eps_b = _hash_std_normal((1, dpad), base_b)            # single row, no slice

    # bf16-stored params, f32 math; sigma==0 in padded region keeps padded lanes zero.
    w = wmu_ref[...].astype(jnp.float32) + wsig_ref[...].astype(jnp.float32) * eps_w
    b = bmu_ref[...].astype(jnp.float32) + bsig_ref[...].astype(jnp.float32) * eps_b

    h = h_ref[...]
    z = jnp.dot(h.astype(jnp.bfloat16), w.astype(jnp.bfloat16),
                preferred_element_type=jnp.float32) + b    # native bf16 MXU, f32 acc

    @pl.when(l < n_l - 1)                                  # hidden layers: ReLU, carry
    def _():
        h_ref[...] = jnp.maximum(z, 0.0)

    @pl.when(l == n_l - 1)                                 # classifier: logits out
    def _():
        o_ref[...] = z.astype(o_ref.dtype)


def vcl_model_forward(x, params, seed):
    """VCLModel.forward: hidden VCL layers with ReLU, then VCL classifier (no ReLU).

    All layers fused into one pallas_call with a (batch_tile, layer) grid; the activation
    lives in a VMEM scratch carry and reparameterization noise is hashed on-chip.
    """
    w_mu, w_sig = params["w_mu"], params["w_sigma"]
    b_mu, b_sig = params["b_mu"], params["b_sigma"]
    dims = params["layer_dims"]
    dpad = params["dpad"]
    n_layers = w_mu.shape[0]
    output_dim = dims[-1]

    batch, in_dim = x.shape
    batch_pad = _round_up(batch, _SUBLANE)
    tile_b = 128 if batch_pad % 128 == 0 else batch_pad

    x_pad = jnp.zeros((batch_pad, dpad), jnp.float32)
    x_pad = x_pad.at[:batch, :in_dim].set(x.astype(jnp.float32))

    seed_arr = jnp.asarray([seed], dtype=jnp.int32)
    eps_stride = dpad * (dpad + 1)      # counters consumed per layer (W + bias)

    kernel = functools.partial(_fused_vcl_kernel, eps_stride=eps_stride, dpad=dpad)

    out = pl.pallas_call(
        kernel,
        out_shape=jax.ShapeDtypeStruct((batch_pad, dpad), jnp.float32),
        grid=(batch_pad // tile_b, n_layers),
        in_specs=[
            pl.BlockSpec(memory_space=pltpu.MemorySpace.SMEM),           # seed
            pl.BlockSpec((tile_b, dpad), lambda b, l: (b, 0)),           # x
            pl.BlockSpec((None, dpad, dpad), lambda b, l: (l, 0, 0)),    # weight_mu
            pl.BlockSpec((None, dpad, dpad), lambda b, l: (l, 0, 0)),    # weight_sigma
            pl.BlockSpec((None, 1, dpad), lambda b, l: (l, 0, 0)),       # bias_mu
            pl.BlockSpec((None, 1, dpad), lambda b, l: (l, 0, 0)),       # bias_sigma
        ],
        out_specs=pl.BlockSpec((tile_b, dpad), lambda b, l: (b, 0)),
        scratch_shapes=[pltpu.VMEM((tile_b, dpad), jnp.float32)],        # activation carry
        compiler_params=pltpu.CompilerParams(
            dimension_semantics=("parallel", "arbitrary"),
            vmem_limit_bytes=32 * 1024 * 1024),
    )(seed_arr, x_pad, w_mu, w_sig, b_mu, b_sig)

    return out[:batch, :output_dim]


def init_vcl_params(key, input_dim, output_dim, hidden_dims, init_log_var=-6.0):
    """Synthetic VCLLayer parameters matching VCLModel.__init__ shapes, stored TPU-ready:

      * all layers are padded to a common (dpad, dpad) tile and stacked along axis 0 so a
        single layer-grid pallas_call can iterate them,
      * weight_mu/sigma are (in, out)-oriented (init_mle stores the transposed weight),
      * sigma = exp(0.5 * log_var) is precomputed here (parameter-update time), so the
        forward kernel needs no exp; padded sigma entries are zero,
      * everything is stored bf16 to halve HBM traffic (math is f32 in-kernel).
    """
    dims = [input_dim] + list(hidden_dims) + [output_dim]
    dpad = max(_round_up(d, _LANE) for d in dims)
    n_layers = len(dims) - 1
    sigma0 = float(np.exp(0.5 * init_log_var))

    w_mu = np.zeros((n_layers, dpad, dpad), np.float32)
    w_sig = np.zeros((n_layers, dpad, dpad), np.float32)
    b_mu = np.zeros((n_layers, 1, dpad), np.float32)
    b_sig = np.zeros((n_layers, 1, dpad), np.float32)
    for i, (din, dout) in enumerate(zip(dims[:-1], dims[1:])):
        key, kw, kb = jax.random.split(key, 3)
        w_mu[i, :din, :dout] = 0.1 * np.asarray(jax.random.normal(kw, (din, dout)))
        w_sig[i, :din, :dout] = sigma0
        b_mu[i, 0, :dout] = 0.1 * np.asarray(jax.random.normal(kb, (dout,)))
        b_sig[i, 0, :dout] = sigma0

    return dict(
        w_mu=jnp.asarray(w_mu, jnp.bfloat16),
        w_sigma=jnp.asarray(w_sig, jnp.bfloat16),
        b_mu=jnp.asarray(b_mu, jnp.bfloat16),
        b_sigma=jnp.asarray(b_sig, jnp.bfloat16),
        layer_dims=dims,
        dpad=dpad,
    )


def ref_det_forward(x, params):
    """Pure-JAX reference for the sigma=0 (deterministic) path, mirroring the kernel's
    bf16-input / f32-accumulate matmuls."""
    dims = params["layer_dims"]
    n_layers = params["w_mu"].shape[0]
    h = x.astype(jnp.float32)
    for i in range(n_layers):
        din, dout = dims[i], dims[i + 1]
        w = params["w_mu"][i, :din, :dout].astype(jnp.float32)
        b = params["b_mu"][i, 0, :dout].astype(jnp.float32)
        hq = h.astype(jnp.bfloat16).astype(jnp.float32)
        h = hq @ w + b
        if i < n_layers - 1:
            h = jnp.maximum(h, 0.0)
    return h


if __name__ == "__main__":
    # Small MLP-style shapes: batch=8, input_dim=32, hidden_dims=[64, 32], output_dim=16.
    batch, input_dim, output_dim = 8, 32, 16
    hidden_dims = [64, 32]

    key = jax.random.PRNGKey(0)
    key, k_params, k_x = jax.random.split(key, 3)

    params = init_vcl_params(k_params, input_dim, output_dim, hidden_dims)
    x = jax.random.normal(k_x, (batch, input_dim), jnp.float32)

    # Sampled forward (reparameterization noise hashed inside the kernel).
    out = jax.block_until_ready(vcl_model_forward(x, params, seed=0))
    assert out.shape == (batch, output_dim)
    assert bool(jnp.all(jnp.isfinite(out)))

    # Different seed -> different weight sample -> different logits.
    out2 = jax.block_until_ready(vcl_model_forward(x, params, seed=1))
    assert not bool(jnp.allclose(out, out2)), "noise path appears inactive"

    # Exact-path correctness check of the fused matmul/bias/ReLU/padding pipeline:
    # with sigma == 0 the sampled layers are deterministic (W = mu, b = bias_mu).
    det_params = dict(params)
    det_params["w_sigma"] = jnp.zeros_like(params["w_sigma"])
    det_params["b_sigma"] = jnp.zeros_like(params["b_sigma"])
    out_det = jax.block_until_ready(vcl_model_forward(x, det_params, seed=0))
    ref = ref_det_forward(x, params)
    assert jnp.allclose(out_det, ref, atol=1e-3, rtol=1e-3), \
        float(jnp.max(jnp.abs(out_det - ref)))

    print("KERNEL_OK")
</pallas_src>

<mosaic_0001>
module attributes {stable_mosaic.version = 11 : i64} {
  func.func @_fused_vcl_kernel(%arg0: i32, %arg1: i32, %arg2: memref<1xi32, #tpu.memory_space<smem>>, %arg3: memref<8x128xf32, #tpu.memory_space<vmem>>, %arg4: memref<1x128x128xbf16, #tpu.memory_space<vmem>>, %arg5: memref<1x128x128xbf16, #tpu.memory_space<vmem>>, %arg6: memref<1x1x128xbf16, #tpu.memory_space<vmem>>, %arg7: memref<1x1x128xbf16, #tpu.memory_space<vmem>>, %arg8: memref<8x128xf32, #tpu.memory_space<vmem>>, %arg9: memref<8x128xf32, #tpu.memory_space<vmem>>) attributes {dimension_semantics = [#tpu.dimension_semantics<parallel>, #tpu.dimension_semantics<arbitrary>], iteration_bounds = array<i64: 1, 3>, scalar_prefetch = 0 : i64, scratch_operands = 1 : i64, tpu.core_type = #tpu.core_type<tc>, window_params = [{transform_indices = @transform_0, window_bounds = array<i64: 1>}, {transform_indices = @transform_1, window_bounds = array<i64: 8, 128>}, {transform_indices = @transform_2, window_bounds = array<i64: 1, 128, 128>}, {transform_indices = @transform_3, window_bounds = array<i64: 1, 128, 128>}, {transform_indices = @transform_4, window_bounds = array<i64: 1, 1, 128>}, {transform_indices = @transform_5, window_bounds = array<i64: 1, 1, 128>}, {transform_indices = @transform_6, window_bounds = array<i64: 8, 128>}]} {
    %c0_i32 = arith.constant 0 : i32
    %0 = arith.cmpi eq, %arg1, %c0_i32 : i32
    %1 = arith.extui %0 : i1 to i32
    %c0_i32_0 = arith.constant 0 : i32
    %2 = arith.cmpi ne, %1, %c0_i32_0 : i32
    scf.if %2 {
      %c0_100 = arith.constant 0 : index
      %c0_101 = arith.constant 0 : index
      %276 = vector.load %arg3[%c0_100, %c0_101] : memref<8x128xf32, #tpu.memory_space<vmem>>, vector<8x128xf32>
      %c0_102 = arith.constant 0 : index
      %c0_103 = arith.constant 0 : index
      %277 = vector.load %arg9[%c0_102, %c0_103] : memref<8x128xf32, #tpu.memory_space<vmem>>, vector<8x128xf32>
      tpu.vector_store %arg9[%c0_102, %c0_103], %276 {strides = array<i32>} : memref<8x128xf32, #tpu.memory_space<vmem>>, vector<8x128xf32>,
    } else {
    }
    %c0 = arith.constant 0 : index
    %3 = memref.load %arg2[%c0] : memref<1xi32, #tpu.memory_space<smem>>
    %c16_i32 = arith.constant 16 : i32
    %4 = arith.shrsi %3, %c16_i32 : i32
    %c65535_i32 = arith.constant 65535 : i32
    %5 = arith.andi %4, %c65535_i32 : i32
    %6 = arith.xori %3, %5 : i32
    %c-2048144789_i32 = arith.constant -2048144789 : i32
    %7 = arith.muli %6, %c-2048144789_i32 : i32
    %c13_i32 = arith.constant 13 : i32
    %8 = arith.shrsi %7, %c13_i32 : i32
    %c524287_i32 = arith.constant 524287 : i32
    %9 = arith.andi %8, %c524287_i32 : i32
    %10 = arith.xori %7, %9 : i32
    %c-1028477387_i32 = arith.constant -1028477387 : i32
    %11 = arith.muli %10, %c-1028477387_i32 : i32
    %c16_i32_1 = arith.constant 16 : i32
    %12 = arith.shrsi %11, %c16_i32_1 : i32
    %c65535_i32_2 = arith.constant 65535 : i32
    %13 = arith.andi %12, %c65535_i32_2 : i32
    %14 = arith.xori %11, %13 : i32
    %c16512_i32 = arith.constant 16512 : i32
    %15 = arith.muli %arg1, %c16512_i32 : i32
    %16 = arith.addi %14, %15 : i32
    %c16384_i32 = arith.constant 16384 : i32
    %17 = arith.addi %16, %c16384_i32 : i32
    %18 = tpu.iota {dimensions = array<i32: 0>} : vector<128x128xi32>
    %19 = tpu.iota {dimensions = array<i32: 1>} : vector<128x128xi32>
    %c128_i32 = arith.constant 128 : i32
    %20 = vector.broadcast %c128_i32 : i32 to vector<128x128xi32>
    %21 = arith.muli %18, %20 : vector<128x128xi32>
    %22 = arith.addi %21, %19 : vector<128x128xi32>
    %23 = vector.broadcast %16 : i32 to vector<128x128xi32>
    %24 = arith.addi %22, %23 : vector<128x128xi32>
    %c16_i32_3 = arith.constant 16 : i32
    %25 = vector.broadcast %c16_i32_3 : i32 to vector<128x128xi32>
    %26 = arith.shrsi %24, %25 : vector<128x128xi32>
    %c65535_i32_4 = arith.constant 65535 : i32
    %27 = vector.broadcast %c65535_i32_4 : i32 to vector<128x128xi32>
    %28 = arith.andi %26, %27 : vector<128x128xi32>
    %29 = arith.xori %24, %28 : vector<128x128xi32>
    %c-2048144789_i32_5 = arith.constant -2048144789 : i32
    %30 = vector.broadcast %c-2048144789_i32_5 : i32 to vector<128x128xi32>
    %31 = arith.muli %29, %30 : vector<128x128xi32>
    %c13_i32_6 = arith.constant 13 : i32
    %32 = vector.broadcast %c13_i32_6 : i32 to vector<128x128xi32>
    %33 = arith.shrsi %31, %32 : vector<128x128xi32>
    %c524287_i32_7 = arith.constant 524287 : i32
    %34 = vector.broadcast %c524287_i32_7 : i32 to vector<128x128xi32>
    %35 = arith.andi %33, %34 : vector<128x128xi32>
    %36 = arith.xori %31, %35 : vector<128x128xi32>
    %c-1028477387_i32_8 = arith.constant -1028477387 : i32
    %37 = vector.broadcast %c-1028477387_i32_8 : i32 to vector<128x128xi32>
    %38 = arith.muli %36, %37 : vector<128x128xi32>
    %c16_i32_9 = arith.constant 16 : i32
    %39 = vector.broadcast %c16_i32_9 : i32 to vector<128x128xi32>
    %40 = arith.shrsi %38, %39 : vector<128x128xi32>
    %c65535_i32_10 = arith.constant 65535 : i32
    %41 = vector.broadcast %c65535_i32_10 : i32 to vector<128x128xi32>
    %42 = arith.andi %40, %41 : vector<128x128xi32>
    %43 = arith.xori %38, %42 : vector<128x128xi32>
    %c8388607_i32 = arith.constant 8388607 : i32
    %44 = vector.broadcast %c8388607_i32 : i32 to vector<128x128xi32>
    %45 = arith.andi %43, %44 : vector<128x128xi32>
    %46 = arith.sitofp %45 : vector<128x128xi32> to vector<128x128xf32>
    %cst = arith.constant 5.000000e-01 : f32
    %47 = vector.broadcast %cst : f32 to vector<128x128xf32>
    %48 = arith.addf %46, %47 : vector<128x128xf32>
    %cst_11 = arith.constant 1.1920929E-7 : f32
    %49 = vector.broadcast %cst_11 : f32 to vector<128x128xf32>
    %50 = arith.mulf %48, %49 : vector<128x128xf32>
    %cst_12 = arith.constant 5.000000e-01 : f32
    %51 = vector.broadcast %cst_12 : f32 to vector<128x128xf32>
    %52 = arith.subf %50, %51 : vector<128x128xf32>
    %53 = arith.mulf %52, %52 : vector<128x128xf32>
    %cst_13 = arith.constant -39.6968307 : f32
    %54 = vector.broadcast %cst_13 : f32 to vector<128x128xf32>
    %55 = arith.mulf %54, %53 : vector<128x128xf32>
    %cst_14 = arith.constant 220.946106 : f32
    %56 = vector.broadcast %cst_14 : f32 to vector<128x128xf32>
    %57 = arith.addf %55, %56 : vector<128x128xf32>
    %58 = arith.mulf %57, %53 : vector<128x128xf32>
    %cst_15 = arith.constant -275.928497 : f32
    %59 = vector.broadcast %cst_15 : f32 to vector<128x128xf32>
    %60 = arith.addf %58, %59 : vector<128x128xf32>
    %61 = arith.mulf %60, %53 : vector<128x128xf32>
    %cst_16 = arith.constant 138.357758 : f32
    %62 = vector.broadcast %cst_16 : f32 to vector<128x128xf32>
    %63 = arith.addf %61, %62 : vector<128x128xf32>
    %64 = arith.mulf %63, %53 : vector<128x128xf32>
    %cst_17 = arith.constant -30.6647987 : f32
    %65 = vector.broadcast %cst_17 : f32 to vector<128x128xf32>
    %66 = arith.addf %64, %65 : vector<128x128xf32>
    %67 = arith.mulf %66, %53 : vector<128x128xf32>
    %cst_18 = arith.constant 2.50662827 : f32
    %68 = vector.broadcast %cst_18 : f32 to vector<128x128xf32>
    %69 = arith.addf %67, %68 : vector<128x128xf32>
    %70 = arith.mulf %69, %52 : vector<128x128xf32>
    %cst_19 = arith.constant -54.4760971 : f32
    %71 = vector.broadcast %cst_19 : f32 to vector<128x128xf32>
    %72 = arith.mulf %71, %53 : vector<128x128xf32>
    %cst_20 = arith.constant 161.585831 : f32
    %73 = vector.broadcast %cst_20 : f32 to vector<128x128xf32>
    %74 = arith.addf %72, %73 : vector<128x128xf32>
    %75 = arith.mulf %74, %53 : vector<128x128xf32>
    %cst_21 = arith.constant -155.698975 : f32
    %76 = vector.broadcast %cst_21 : f32 to vector<128x128xf32>
    %77 = arith.addf %75, %76 : vector<128x128xf32>
    %78 = arith.mulf %77, %53 : vector<128x128xf32>
    %cst_22 = arith.constant 66.8013153 : f32
    %79 = vector.broadcast %cst_22 : f32 to vector<128x128xf32>
    %80 = arith.addf %78, %79 : vector<128x128xf32>
    %81 = arith.mulf %80, %53 : vector<128x128xf32>
    %cst_23 = arith.constant -13.2806816 : f32
    %82 = vector.broadcast %cst_23 : f32 to vector<128x128xf32>
    %83 = arith.addf %81, %82 : vector<128x128xf32>
    %84 = arith.mulf %83, %53 : vector<128x128xf32>
    %cst_24 = arith.constant 1.000000e+00 : f32
    %85 = vector.broadcast %cst_24 : f32 to vector<128x128xf32>
    %86 = arith.addf %84, %85 : vector<128x128xf32>
    %87 = arith.divf %70, %86 : vector<128x128xf32>
    %cst_25 = arith.constant 1.000000e+00 : f32
    %88 = vector.broadcast %cst_25 : f32 to vector<128x128xf32>
    %89 = arith.subf %88, %50 : vector<128x128xf32>
    %90 = arith.minimumf %50, %89 : vector<128x128xf32>
    %91 = math.log %90 : vector<128x128xf32>
    %cst_26 = arith.constant -2.000000e+00 : f32
    %92 = vector.broadcast %cst_26 : f32 to vector<128x128xf32>
    %93 = arith.mulf %92, %91 : vector<128x128xf32>
    %94 = math.sqrt %93 : vector<128x128xf32>
    %cst_27 = arith.constant -0.0077848942 : f32
    %95 = vector.broadcast %cst_27 : f32 to vector<128x128xf32>
    %96 = arith.mulf %95, %94 : vector<128x128xf32>
    %cst_28 = arith.constant -0.322396457 : f32
    %97 = vector.broadcast %cst_28 : f32 to vector<128x128xf32>
    %98 = arith.addf %96, %97 : vector<128x128xf32>
    %99 = arith.mulf %98, %94 : vector<128x128xf32>
    %cst_29 = arith.constant -2.40075827 : f32
    %100 = vector.broadcast %cst_29 : f32 to vector<128x128xf32>
    %101 = arith.addf %99, %100 : vector<128x128xf32>
    %102 = arith.mulf %101, %94 : vector<128x128xf32>
    %cst_30 = arith.constant -2.54973245 : f32
    %103 = vector.broadcast %cst_30 : f32 to vector<128x128xf32>
    %104 = arith.addf %102, %103 : vector<128x128xf32>
    %105 = arith.mulf %104, %94 : vector<128x128xf32>
    %cst_31 = arith.constant 4.37466431 : f32
    %106 = vector.broadcast %cst_31 : f32 to vector<128x128xf32>
    %107 = arith.addf %105, %106 : vector<128x128xf32>
    %108 = arith.mulf %107, %94 : vector<128x128xf32>
    %cst_32 = arith.constant 2.938164 : f32
    %109 = vector.broadcast %cst_32 : f32 to vector<128x128xf32>
    %110 = arith.addf %108, %109 : vector<128x128xf32>
    %cst_33 = arith.constant 0.00778469583 : f32
    %111 = vector.broadcast %cst_33 : f32 to vector<128x128xf32>
    %112 = arith.mulf %111, %94 : vector<128x128xf32>
    %cst_34 = arith.constant 0.322467119 : f32
    %113 = vector.broadcast %cst_34 : f32 to vector<128x128xf32>
    %114 = arith.addf %112, %113 : vector<128x128xf32>
    %115 = arith.mulf %114, %94 : vector<128x128xf32>
    %cst_35 = arith.constant 2.44513416 : f32
    %116 = vector.broadcast %cst_35 : f32 to vector<128x128xf32>
    %117 = arith.addf %115, %116 : vector<128x128xf32>
    %118 = arith.mulf %117, %94 : vector<128x128xf32>
    %cst_36 = arith.constant 3.7544086 : f32
    %119 = vector.broadcast %cst_36 : f32 to vector<128x128xf32>
    %120 = arith.addf %118, %119 : vector<128x128xf32>
    %121 = arith.mulf %120, %94 : vector<128x128xf32>
    %cst_37 = arith.constant 1.000000e+00 : f32
    %122 = vector.broadcast %cst_37 : f32 to vector<128x128xf32>
    %123 = arith.addf %121, %122 : vector<128x128xf32>
    %124 = arith.divf %110, %123 : vector<128x128xf32>
    %cst_38 = arith.constant 5.000000e-01 : f32
    %125 = vector.broadcast %cst_38 : f32 to vector<128x128xf32>
    %126 = arith.cmpf ogt, %50, %125 : vector<128x128xf32>
    %cst_39 = arith.constant 0.000000e+00 : f32
    %127 = vector.broadcast %cst_39 : f32 to vector<128x128xf32>
    %128 = arith.subf %127, %124 : vector<128x128xf32>
    %129 = arith.select %126, %128, %124 : vector<128x128xi1>, vector<128x128xf32>
    %cst_40 = arith.constant 2.425000e-02 : f32
    %130 = vector.broadcast %cst_40 : f32 to vector<128x128xf32>
    %131 = arith.cmpf olt, %90, %130 : vector<128x128xf32>
    %132 = arith.select %131, %129, %87 : vector<128x128xi1>, vector<128x128xf32>
    %133 = tpu.iota {dimensions = array<i32: 0>} : vector<1x128xi32>
    %134 = tpu.iota {dimensions = array<i32: 1>} : vector<1x128xi32>
    %c128_i32_41 = arith.constant 128 : i32
    %135 = vector.broadcast %c128_i32_41 : i32 to vector<1x128xi32>
    %136 = arith.muli %133, %135 : vector<1x128xi32>
    %137 = arith.addi %136, %134 : vector<1x128xi32>
    %138 = vector.broadcast %17 : i32 to vector<1x128xi32>
    %139 = arith.addi %137, %138 : vector<1x128xi32>
    %c16_i32_42 = arith.constant 16 : i32
    %140 = vector.broadcast %c16_i32_42 : i32 to vector<1x128xi32>
    %141 = arith.shrsi %139, %140 : vector<1x128xi32>
    %c65535_i32_43 = arith.constant 65535 : i32
    %142 = vector.broadcast %c65535_i32_43 : i32 to vector<1x128xi32>
    %143 = arith.andi %141, %142 : vector<1x128xi32>
    %144 = arith.xori %139, %143 : vector<1x128xi32>
    %c-2048144789_i32_44 = arith.constant -2048144789 : i32
    %145 = vector.broadcast %c-2048144789_i32_44 : i32 to vector<1x128xi32>
    %146 = arith.muli %144, %145 : vector<1x128xi32>
    %c13_i32_45 = arith.constant 13 : i32
    %147 = vector.broadcast %c13_i32_45 : i32 to vector<1x128xi32>
    %148 = arith.shrsi %146, %147 : vector<1x128xi32>
    %c524287_i32_46 = arith.constant 524287 : i32
    %149 = vector.broadcast %c524287_i32_46 : i32 to vector<1x128xi32>
    %150 = arith.andi %148, %149 : vector<1x128xi32>
    %151 = arith.xori %146, %150 : vector<1x128xi32>
    %c-1028477387_i32_47 = arith.constant -1028477387 : i32
    %152 = vector.broadcast %c-1028477387_i32_47 : i32 to vector<1x128xi32>
    %153 = arith.muli %151, %152 : vector<1x128xi32>
    %c16_i32_48 = arith.constant 16 : i32
    %154 = vector.broadcast %c16_i32_48 : i32 to vector<1x128xi32>
    %155 = arith.shrsi %153, %154 : vector<1x128xi32>
    %c65535_i32_49 = arith.constant 65535 : i32
    %156 = vector.broadcast %c65535_i32_49 : i32 to vector<1x128xi32>
    %157 = arith.andi %155, %156 : vector<1x128xi32>
    %158 = arith.xori %153, %157 : vector<1x128xi32>
    %c8388607_i32_50 = arith.constant 8388607 : i32
    %159 = vector.broadcast %c8388607_i32_50 : i32 to vector<1x128xi32>
    %160 = arith.andi %158, %159 : vector<1x128xi32>
    %161 = arith.sitofp %160 : vector<1x128xi32> to vector<1x128xf32>
    %cst_51 = arith.constant 5.000000e-01 : f32
    %162 = vector.broadcast %cst_51 : f32 to vector<1x128xf32>
    %163 = arith.addf %161, %162 : vector<1x128xf32>
    %cst_52 = arith.constant 1.1920929E-7 : f32
    %164 = vector.broadcast %cst_52 : f32 to vector<1x128xf32>
    %165 = arith.mulf %163, %164 : vector<1x128xf32>
    %cst_53 = arith.constant 5.000000e-01 : f32
    %166 = vector.broadcast %cst_53 : f32 to vector<1x128xf32>
    %167 = arith.subf %165, %166 : vector<1x128xf32>
    %168 = arith.mulf %167, %167 : vector<1x128xf32>
    %cst_54 = arith.constant -39.6968307 : f32
    %169 = vector.broadcast %cst_54 : f32 to vector<1x128xf32>
    %170 = arith.mulf %169, %168 : vector<1x128xf32>
    %cst_55 = arith.constant 220.946106 : f32
    %171 = vector.broadcast %cst_55 : f32 to vector<1x128xf32>
    %172 = arith.addf %170, %171 : vector<1x128xf32>
    %173 = arith.mulf %172, %168 : vector<1x128xf32>
    %cst_56 = arith.constant -275.928497 : f32
    %174 = vector.broadcast %cst_56 : f32 to vector<1x128xf32>
    %175 = arith.addf %173, %174 : vector<1x128xf32>
    %176 = arith.mulf %175, %168 : vector<1x128xf32>
    %cst_57 = arith.constant 138.357758 : f32
    %177 = vector.broadcast %cst_57 : f32 to vector<1x128xf32>
    %178 = arith.addf %176, %177 : vector<1x128xf32>
    %179 = arith.mulf %178, %168 : vector<1x128xf32>
    %cst_58 = arith.constant -30.6647987 : f32
    %180 = vector.broadcast %cst_58 : f32 to vector<1x128xf32>
    %181 = arith.addf %179, %180 : vector<1x128xf32>
    %182 = arith.mulf %181, %168 : vector<1x128xf32>
    %cst_59 = arith.constant 2.50662827 : f32
    %183 = vector.broadcast %cst_59 : f32 to vector<1x128xf32>
    %184 = arith.addf %182, %183 : vector<1x128xf32>
    %185 = arith.mulf %184, %167 : vector<1x128xf32>
    %cst_60 = arith.constant -54.4760971 : f32
    %186 = vector.broadcast %cst_60 : f32 to vector<1x128xf32>
    %187 = arith.mulf %186, %168 : vector<1x128xf32>
    %cst_61 = arith.constant 161.585831 : f32
    %188 = vector.broadcast %cst_61 : f32 to vector<1x128xf32>
    %189 = arith.addf %187, %188 : vector<1x128xf32>
    %190 = arith.mulf %189, %168 : vector<1x128xf32>
    %cst_62 = arith.constant -155.698975 : f32
    %191 = vector.broadcast %cst_62 : f32 to vector<1x128xf32>
    %192 = arith.addf %190, %191 : vector<1x128xf32>
    %193 = arith.mulf %192, %168 : vector<1x128xf32>
    %cst_63 = arith.constant 66.8013153 : f32
    %194 = vector.broadcast %cst_63 : f32 to vector<1x128xf32>
    %195 = arith.addf %193, %194 : vector<1x128xf32>
    %196 = arith.mulf %195, %168 : vector<1x128xf32>
    %cst_64 = arith.constant -13.2806816 : f32
    %197 = vector.broadcast %cst_64 : f32 to vector<1x128xf32>
    %198 = arith.addf %196, %197 : vector<1x128xf32>
    %199 = arith.mulf %198, %168 : vector<1x128xf32>
    %cst_65 = arith.constant 1.000000e+00 : f32
    %200 = vector.broadcast %cst_65 : f32 to vector<1x128xf32>
    %201 = arith.addf %199, %200 : vector<1x128xf32>
    %202 = arith.divf %185, %201 : vector<1x128xf32>
    %cst_66 = arith.constant 1.000000e+00 : f32
    %203 = vector.broadcast %cst_66 : f32 to vector<1x128xf32>
    %204 = arith.subf %203, %165 : vector<1x128xf32>
    %205 = arith.minimumf %165, %204 : vector<1x128xf32>
    %206 = math.log %205 : vector<1x128xf32>
    %cst_67 = arith.constant -2.000000e+00 : f32
    %207 = vector.broadcast %cst_67 : f32 to vector<1x128xf32>
    %208 = arith.mulf %207, %206 : vector<1x128xf32>
    %209 = math.sqrt %208 : vector<1x128xf32>
    %cst_68 = arith.constant -0.0077848942 : f32
    %210 = vector.broadcast %cst_68 : f32 to vector<1x128xf32>
    %211 = arith.mulf %210, %209 : vector<1x128xf32>
    %cst_69 = arith.constant -0.322396457 : f32
    %212 = vector.broadcast %cst_69 : f32 to vector<1x128xf32>
    %213 = arith.addf %211, %212 : vector<1x128xf32>
    %214 = arith.mulf %213, %209 : vector<1x128xf32>
    %cst_70 = arith.constant -2.40075827 : f32
    %215 = vector.broadcast %cst_70 : f32 to vector<1x128xf32>
    %216 = arith.addf %214, %215 : vector<1x128xf32>
    %217 = arith.mulf %216, %209 : vector<1x128xf32>
    %cst_71 = arith.constant -2.54973245 : f32
    %218 = vector.broadcast %cst_71 : f32 to vector<1x128xf32>
    %219 = arith.addf %217, %218 : vector<1x128xf32>
    %220 = arith.mulf %219, %209 : vector<1x128xf32>
    %cst_72 = arith.constant 4.37466431 : f32
    %221 = vector.broadcast %cst_72 : f32 to vector<1x128xf32>
    %222 = arith.addf %220, %221 : vector<1x128xf32>
    %223 = arith.mulf %222, %209 : vector<1x128xf32>
    %cst_73 = arith.constant 2.938164 : f32
    %224 = vector.broadcast %cst_73 : f32 to vector<1x128xf32>
    %225 = arith.addf %223, %224 : vector<1x128xf32>
    %cst_74 = arith.constant 0.00778469583 : f32
    %226 = vector.broadcast %cst_74 : f32 to vector<1x128xf32>
    %227 = arith.mulf %226, %209 : vector<1x128xf32>
    %cst_75 = arith.constant 0.322467119 : f32
    %228 = vector.broadcast %cst_75 : f32 to vector<1x128xf32>
    %229 = arith.addf %227, %228 : vector<1x128xf32>
    %230 = arith.mulf %229, %209 : vector<1x128xf32>
    %cst_76 = arith.constant 2.44513416 : f32
    %231 = vector.broadcast %cst_76 : f32 to vector<1x128xf32>
    %232 = arith.addf %230, %231 : vector<1x128xf32>
    %233 = arith.mulf %232, %209 : vector<1x128xf32>
    %cst_77 = arith.constant 3.7544086 : f32
    %234 = vector.broadcast %cst_77 : f32 to vector<1x128xf32>
    %235 = arith.addf %233, %234 : vector<1x128xf32>
    %236 = arith.mulf %235, %209 : vector<1x128xf32>
    %cst_78 = arith.constant 1.000000e+00 : f32
    %237 = vector.broadcast %cst_78 : f32 to vector<1x128xf32>
    %238 = arith.addf %236, %237 : vector<1x128xf32>
    %239 = arith.divf %225, %238 : vector<1x128xf32>
    %cst_79 = arith.constant 5.000000e-01 : f32
    %240 = vector.broadcast %cst_79 : f32 to vector<1x128xf32>
    %241 = arith.cmpf ogt, %165, %240 : vector<1x128xf32>
    %cst_80 = arith.constant 0.000000e+00 : f32
    %242 = vector.broadcast %cst_80 : f32 to vector<1x128xf32>
    %243 = arith.subf %242, %239 : vector<1x128xf32>
    %244 = arith.select %241, %243, %239 : vector<1x128xi1>, vector<1x128xf32>
    %cst_81 = arith.constant 2.425000e-02 : f32
    %245 = vector.broadcast %cst_81 : f32 to vector<1x128xf32>
    %246 = arith.cmpf olt, %205, %245 : vector<1x128xf32>
    %247 = arith.select %246, %244, %202 : vector<1x128xi1>, vector<1x128xf32>
    %c0_82 = arith.constant 0 : index
    %c0_83 = arith.constant 0 : index
    %c0_84 = arith.constant 0 : index
    %248 = vector.load %arg4[%c0_82, %c0_83, %c0_84] : memref<1x128x128xbf16, #tpu.memory_space<vmem>>, vector<1x128x128xbf16>
    %249 = vector.shape_cast %248 : vector<1x128x128xbf16> to vector<128x128xbf16>
    %250 = arith.extf %249 : vector<128x128xbf16> to vector<128x128xf32>
    %c0_85 = arith.constant 0 : index
    %c0_86 = arith.constant 0 : index
    %c0_87 = arith.constant 0 : index
    %251 = vector.load %arg5[%c0_85, %c0_86, %c0_87] : memref<1x128x128xbf16, #tpu.memory_space<vmem>>, vector<1x128x128xbf16>
    %252 = vector.shape_cast %251 : vector<1x128x128xbf16> to vector<128x128xbf16>
    %253 = arith.extf %252 : vector<128x128xbf16> to vector<128x128xf32>
    %254 = arith.mulf %253, %132 : vector<128x128xf32>
    %255 = arith.addf %250, %254 : vector<128x128xf32>
    %c0_88 = arith.constant 0 : index
    %c0_89 = arith.constant 0 : index
    %c0_90 = arith.constant 0 : index
    %256 = vector.load %arg6[%c0_88, %c0_89, %c0_90] : memref<1x1x128xbf16, #tpu.memory_space<vmem>>, vector<1x1x128xbf16>
    %257 = vector.shape_cast %256 : vector<1x1x128xbf16> to vector<1x128xbf16>
    %258 = arith.extf %257 : vector<1x128xbf16> to vector<1x128xf32>
    %c0_91 = arith.constant 0 : index
    %c0_92 = arith.constant 0 : index
    %c0_93 = arith.constant 0 : index
    %259 = vector.load %arg7[%c0_91, %c0_92, %c0_93] : memref<1x1x128xbf16, #tpu.memory_space<vmem>>, vector<1x1x128xbf16>
    %260 = vector.shape_cast %259 : vector<1x1x128xbf16> to vector<1x128xbf16>
    %261 = arith.extf %260 : vector<1x128xbf16> to vector<1x128xf32>
    %262 = arith.mulf %261, %247 : vector<1x128xf32>
    %263 = arith.addf %258, %262 : vector<1x128xf32>
    %c0_94 = arith.constant 0 : index
    %c0_95 = arith.constant 0 : index
    %264 = vector.load %arg9[%c0_94, %c0_95] : memref<8x128xf32, #tpu.memory_space<vmem>>, vector<8x128xf32>
    %265 = arith.truncf %264 : vector<8x128xf32> to vector<8x128xbf16>
    %266 = arith.truncf %255 : vector<128x128xf32> to vector<128x128xbf16>
    %cst_96 = arith.constant dense<0.000000e+00> : vector<8x128xf32>
    %267 = tpu.matmul %265, %266, %cst_96 {dimension_numbers = #tpu.dot_dimension_numbers<[1], [0], [0], [1], [0, 0, 1, 1], [], []>} : vector<8x128xbf16>, vector<128x128xbf16>, vector<8x128xf32> -> vector<8x128xf32>
    %268 = vector.broadcast %263 : vector<1x128xf32> to vector<8x128xf32>
    %269 = arith.addf %267, %268 : vector<8x128xf32>
    %c2_i32 = arith.constant 2 : i32
    %270 = arith.cmpi slt, %arg1, %c2_i32 : i32
    %271 = arith.extui %270 : i1 to i32
    %c0_i32_97 = arith.constant 0 : i32
    %272 = arith.cmpi ne, %271, %c0_i32_97 : i32
    scf.if %272 {
      %cst_100 = arith.constant 0.000000e+00 : f32
      %276 = vector.broadcast %cst_100 : f32 to vector<8x128xf32>
      %277 = arith.maximumf %269, %276 : vector<8x128xf32>
      %c0_101 = arith.constant 0 : index
      %c0_102 = arith.constant 0 : index
      %278 = vector.load %arg9[%c0_101, %c0_102] : memref<8x128xf32, #tpu.memory_space<vmem>>, vector<8x128xf32>
      tpu.vector_store %arg9[%c0_101, %c0_102], %277 {strides = array<i32>} : memref<8x128xf32, #tpu.memory_space<vmem>>, vector<8x128xf32>,
    } else {
    }
    %c2_i32_98 = arith.constant 2 : i32
    %273 = arith.cmpi eq, %arg1, %c2_i32_98 : i32
    %274 = arith.extui %273 : i1 to i32
    %c0_i32_99 = arith.constant 0 : i32
    %275 = arith.cmpi ne, %274, %c0_i32_99 : i32
    scf.if %275 {
      %c0_100 = arith.constant 0 : index
      %c0_101 = arith.constant 0 : index
      %276 = vector.load %arg8[%c0_100, %c0_101] : memref<8x128xf32, #tpu.memory_space<vmem>>, vector<8x128xf32>
      tpu.vector_store %arg8[%c0_100, %c0_101], %269 {strides = array<i32>} : memref<8x128xf32, #tpu.memory_space<vmem>>, vector<8x128xf32>,
    } else {
    }
    return
  }
  func.func @transform_0(%arg0: i32, %arg1: i32) -> i32 {
    %c0_i32 = arith.constant 0 : i32
    %c0_i32_0 = arith.constant 0 : i32
    return %c0_i32 : i32
  }
  func.func @transform_1(%arg0: i32, %arg1: i32) -> (i32, i32) {
    %c0_i32 = arith.constant 0 : i32
    %c0_i32_0 = arith.constant 0 : i32
    return %arg0, %c0_i32 : i32, i32
  }
  func.func @transform_2(%arg0: i32, %arg1: i32) -> (i32, i32, i32) {
    %c0_i32 = arith.constant 0 : i32
    %c0_i32_0 = arith.constant 0 : i32
    %c0_i32_1 = arith.constant 0 : i32
    return %arg1, %c0_i32, %c0_i32_0 : i32, i32, i32
  }
  func.func @transform_3(%arg0: i32, %arg1: i32) -> (i32, i32, i32) {
    %c0_i32 = arith.constant 0 : i32
    %c0_i32_0 = arith.constant 0 : i32
    %c0_i32_1 = arith.constant 0 : i32
    return %arg1, %c0_i32, %c0_i32_0 : i32, i32, i32
  }
  func.func @transform_4(%arg0: i32, %arg1: i32) -> (i32, i32, i32) {
    %c0_i32 = arith.constant 0 : i32
    %c0_i32_0 = arith.constant 0 : i32
    %c0_i32_1 = arith.constant 0 : i32
    return %arg1, %c0_i32, %c0_i32_0 : i32, i32, i32
  }
  func.func @transform_5(%arg0: i32, %arg1: i32) -> (i32, i32, i32) {
    %c0_i32 = arith.constant 0 : i32
    %c0_i32_0 = arith.constant 0 : i32
    %c0_i32_1 = arith.constant 0 : i32
    return %arg1, %c0_i32, %c0_i32_0 : i32, i32, i32
  }
  func.func @transform_6(%arg0: i32, %arg1: i32) -> (i32, i32) {
    %c0_i32 = arith.constant 0 : i32
    %c0_i32_0 = arith.constant 0 : i32
    return %arg0, %c0_i32 : i32, i32
  }
}

</mosaic_0001>

<llo_original>
// kernel: tpu_custom_call.1
$region0: #{tpu_custom_call.1}
  #allocation0 [shape = 'u32[]', space=smem, size = 0x4, offset = 0x4, fixed_abs, tag = 'smem constant byte address 0x4 - core index']
  #allocation1 [shape = 'u32[144,128]{1,0:T(1,128)}', space=vmem, size = 0x12000, scoped, tag = 'internal scratch']
  #allocation2 [shape = 'f32[8,128]{1,0:T(8,128)}', space=vmem, size = 0x1000, scoped, tag = 'scratch operand']
  #allocation3 [shape = 's32[1]{0:T(128)S(6)}', space=smem, size = 0x200, scoped, tag = 'scoped memory for tpu_custom_call.1']
  %s0 = inlined_call_operand.<no memory space> [shape: s32[1], index: 0, kind: input, shape index: {}]
  %s1 = inlined_call_operand.vmem [shape: f32[8,128], index: 1, kind: input, shape index: {}]
  %s2 = inlined_call_operand.hbm [shape: bf16[3,128,128], index: 2, kind: input, shape index: {}]
  %s3 = inlined_call_operand.hbm [shape: bf16[3,128,128], index: 3, kind: input, shape index: {}]
  %s4 = inlined_call_operand.vmem [shape: bf16[3,1,128], index: 4, kind: input, shape index: {}]
  %s5 = inlined_call_operand.vmem [shape: bf16[3,1,128], index: 5, kind: input, shape index: {}]
  %s6 = inlined_call_operand.hbm [shape: f32[8,128], index: 6, kind: output, shape index: {}]
  %s7 = sld [smem:[#allocation0]]
  $region77: #{tpu_custom_call.1} parent=0
    _
  %s9 = ssub.s32 1, %s7
  %s10 = scalar_select 0, %s9, %s7
  %11 = sst [smem:[#allocation3]] %s0
  $region1: #{tpu_custom_call.1} parent=0
    #allocation4 [shape = 'u8[65536]{0}', space=vmem, size = 0x10000, scoped, tag = 'input window, operand 2']
    #allocation5 [shape = 's32[2]{0}', space=sflag, size = 0x8, scoped, tag = 'scoped memory for tpu_custom_call.1']
    #allocation6 [shape = 's32[2]{0}', space=sflag, size = 0x8, scoped, tag = 'scoped memory for tpu_custom_call.1']
    #allocation7 [shape = 'u8[65536]{0}', space=vmem, size = 0x10000, scoped, tag = 'input window, operand 3']
    #allocation8 [shape = 's32[2]{0}', space=sflag, size = 0x8, scoped, tag = 'scoped memory for tpu_custom_call.1']
    #allocation9 [shape = 'u8[4096]{0}', space=vmem, size = 0x1000, scoped, tag = 'output window, operand 0, single buffered']
    %12 = vsyncpa [#allocation5], 0
    %s13 = scalar_lea.sflag [#allocation5], 1
    %14 = vsyncpa %s13, 0
    %15 = vsyncpa [#allocation8], 0
    %s16 = scalar_lea.sflag [#allocation8], 1
    %17 = vsyncpa %s16, 0
    %18 = vsyncpa [#allocation6], 0
    loop: start=0, step=1, limit=5
    $region2: #{tpu_custom_call.1} parent=1 // loop_pre_header
      _
    $region3: #{tpu_custom_call.1} parent=1 // loop_header
      %s20 = sphi 0, %s24
      %p21 = scmp.ge.s32.totalorder %s20, 5
      %s27 = sphi 0, %s39
      %s28 = sphi 0, %s35
      %s29 = sphi 0, %s27
      %s30 = sphi 0, %s28
      %s31 = sphi 0, %s29
      %s32 = sphi 0, %s30
      %s40 = sphi 0, %s40
      %s42 = sphi 0, %s40
      %s43 = sphi 0, %s42
      %s57 = sphi 0, %s43
      %s63 = sphi 0, %s65
      %s66 = sphi 0, %s63
      %s67 = sphi 0, %s66
      %s83 = sphi 0, %s67
      %s89 = sphi 0, %s91
      %s92 = sphi 0, %s89
      %s93 = sphi 0, %s92
      %s109 = sphi 0, %s93
      %s115 = sphi 0, %s117
      %s118 = sphi 0, %s115
      %s119 = sphi 0, %s118
      %s135 = sphi 0, %s119
      %s141 = sphi 0, %s143
      %s144 = sphi 0, %s141
      %s145 = sphi 0, %s144
      %s161 = sphi 0, %s145
      %s167 = sphi 0, %s169
      %s170 = sphi 0, %s167
      %s171 = sphi 0, %s170
      %s187 = sphi 0, %s171
      %s193 = sphi 0, %s195
      %s196 = sphi 0, %s193
      %s197 = sphi 0, %s196
      %s213 = sphi 0, %s197
    $region4: #{tpu_custom_call.1} parent=1 // loop_header_branch
      %23 = sbr.rel (%p21) target = $region8
    $region5: #{tpu_custom_call.1} parent=1 // loop_body
      %s25 = ssub.s32 %s20, 1
      %s26 = ssub.s32 %s20, 2
      %s33 = sadd.s32 1, %s28
      %p34 = scmp.ge.s32.totalorder %s33, 3
      %s35 = scalar_select %p34, 0, %s33
      %s36 = sadd.s32 1, %s27
      %s37 = scalar_select %p34, %s36, %s27
      %p38 = scmp.ge.s32.totalorder %s37, 1
      %s39 = scalar_select %p38, 0, %s37
      %s41 = sadd.s32 %s40, 1
      %p44 = scmp.eq.s32.totalorder %s20, 2
      %p45 = scmp.ne.s32.totalorder %s40, %s42
      %p46 = scmp.eq.s32.totalorder %s20, 0
      %p47 = por %p45, %p46
      %p48 = scmp.ne.s32.totalorder %s40, %s42
      %p49 = scmp.eq.s32.totalorder %s25, 2
      %p50 = por %p48, %p49
      %p51 = scmp.ne.s32.totalorder %s42, %s43
      %p52 = scmp.eq.s32.totalorder %s25, 0
      %p53 = por %p51, %p52
      %p54 = scmp.ne.s32.totalorder %s42, %s43
      %p55 = scmp.eq.s32.totalorder %s26, 2
      %p56 = por %p54, %p55
      %p58 = scmp.ne.s32.totalorder %s43, %s57
      %p59 = scmp.eq.s32.totalorder %s26, 0
      %p60 = por %p58, %p59
      %s61 = ssub.s32 %s27, %s39
      %p62 = scmp.eq.s32.totalorder %s61, 0
      %s64 = sadd.s32 %s63, 1
      %s65 = scalar_select %p62, %s63, %s64
      %p68 = pneg %p62
      %p69 = scmp.eq.s32.totalorder %s20, 2
      %p70 = por %p68, %p69
      %p71 = scmp.ne.s32.totalorder %s63, %s66
      %p72 = scmp.eq.s32.totalorder %s20, 0
      %p73 = por %p71, %p72
      %p74 = scmp.ne.s32.totalorder %s63, %s66
      %p75 = scmp.eq.s32.totalorder %s25, 2
      %p76 = por %p74, %p75
      %p77 = scmp.ne.s32.totalorder %s66, %s67
      %p78 = scmp.eq.s32.totalorder %s25, 0
      %p79 = por %p77, %p78
      %p80 = scmp.ne.s32.totalorder %s66, %s67
      %p81 = scmp.eq.s32.totalorder %s26, 2
      %p82 = por %p80, %p81
      %p84 = scmp.ne.s32.totalorder %s67, %s83
      %p85 = scmp.eq.s32.totalorder %s26, 0
      %p86 = por %p84, %p85
      %s87 = ssub.s32 %s28, %s35
      %p88 = scmp.eq.s32.totalorder %s87, 0
      %s90 = sadd.s32 %s89, 1
      %s91 = scalar_select %p88, %s89, %s90
      %p94 = pneg %p88
      %p95 = scmp.eq.s32.totalorder %s20, 2
      %p96 = por %p94, %p95
      %p97 = scmp.ne.s32.totalorder %s89, %s92
      %p98 = scmp.eq.s32.totalorder %s20, 0
      %p99 = por %p97, %p98
      %p100 = scmp.ne.s32.totalorder %s89, %s92
      %p101 = scmp.eq.s32.totalorder %s25, 2
      %p102 = por %p100, %p101
      %p103 = scmp.ne.s32.totalorder %s92, %s93
      %p104 = scmp.eq.s32.totalorder %s25, 0
      %p105 = por %p103, %p104
      %p106 = scmp.ne.s32.totalorder %s92, %s93
      %p107 = scmp.eq.s32.totalorder %s26, 2
      %p108 = por %p106, %p107
      %p110 = scmp.ne.s32.totalorder %s93, %s109
      %p111 = scmp.eq.s32.totalorder %s26, 0
      %p112 = por %p110, %p111
      %s113 = ssub.s32 %s28, %s35
      %p114 = scmp.eq.s32.totalorder %s113, 0
      %s116 = sadd.s32 %s115, 1
      %s117 = scalar_select %p114, %s115, %s116
      %p120 = pneg %p114
      %p121 = scmp.eq.s32.totalorder %s20, 2
      %p122 = por %p120, %p121
      %p123 = scmp.ne.s32.totalorder %s115, %s118
      %p124 = scmp.eq.s32.totalorder %s20, 0
      %p125 = por %p123, %p124
      %p126 = scmp.ne.s32.totalorder %s115, %s118
      %p127 = scmp.eq.s32.totalorder %s25, 2
      %p128 = por %p126, %p127
      %p129 = scmp.ne.s32.totalorder %s118, %s119
      %p130 = scmp.eq.s32.totalorder %s25, 0
      %p131 = por %p129, %p130
      %p132 = scmp.ne.s32.totalorder %s118, %s119
      %p133 = scmp.eq.s32.totalorder %s26, 2
      %p134 = por %p132, %p133
      %p136 = scmp.ne.s32.totalorder %s119, %s135
      %p137 = scmp.eq.s32.totalorder %s26, 0
      %p138 = por %p136, %p137
      %s139 = ssub.s32 %s28, %s35
      %p140 = scmp.eq.s32.totalorder %s139, 0
      %s142 = sadd.s32 %s141, 1
      %s143 = scalar_select %p140, %s141, %s142
      %p146 = pneg %p140
      %p147 = scmp.eq.s32.totalorder %s20, 2
      %p148 = por %p146, %p147
      %p149 = scmp.ne.s32.totalorder %s141, %s144
      %p150 = scmp.eq.s32.totalorder %s20, 0
      %p151 = por %p149, %p150
      %p152 = scmp.ne.s32.totalorder %s141, %s144
      %p153 = scmp.eq.s32.totalorder %s25, 2
      %p154 = por %p152, %p153
      %p155 = scmp.ne.s32.totalorder %s144, %s145
      %p156 = scmp.eq.s32.totalorder %s25, 0
      %p157 = por %p155, %p156
      %p158 = scmp.ne.s32.totalorder %s144, %s145
      %p159 = scmp.eq.s32.totalorder %s26, 2
      %p160 = por %p158, %p159
      %p162 = scmp.ne.s32.totalorder %s145, %s161
      %p163 = scmp.eq.s32.totalorder %s26, 0
      %p164 = por %p162, %p163
      %s165 = ssub.s32 %s28, %s35
      %p166 = scmp.eq.s32.totalorder %s165, 0
      %s168 = sadd.s32 %s167, 1
      %s169 = scalar_select %p166, %s167, %s168
      %p172 = pneg %p166
      %p173 = scmp.eq.s32.totalorder %s20, 2
      %p174 = por %p172, %p173
      %p175 = scmp.ne.s32.totalorder %s167, %s170
      %p176 = scmp.eq.s32.totalorder %s20, 0
      %p177 = por %p175, %p176
      %p178 = scmp.ne.s32.totalorder %s167, %s170
      %p179 = scmp.eq.s32.totalorder %s25, 2
      %p180 = por %p178, %p179
      %p181 = scmp.ne.s32.totalorder %s170, %s171
      %p182 = scmp.eq.s32.totalorder %s25, 0
      %p183 = por %p181, %p182
      %p184 = scmp.ne.s32.totalorder %s170, %s171
      %p185 = scmp.eq.s32.totalorder %s26, 2
      %p186 = por %p184, %p185
      %p188 = scmp.ne.s32.totalorder %s171, %s187
      %p189 = scmp.eq.s32.totalorder %s26, 0
      %p190 = por %p188, %p189
      %s191 = ssub.s32 %s27, %s39
      %p192 = scmp.eq.s32.totalorder %s191, 0
      %s194 = sadd.s32 %s193, 1
      %s195 = scalar_select %p192, %s193, %s194
      %p198 = pneg %p192
      %p199 = scmp.eq.s32.totalorder %s20, 2
      %p200 = por %p198, %p199
      %p201 = scmp.ne.s32.totalorder %s193, %s196
      %p202 = scmp.eq.s32.totalorder %s20, 0
      %p203 = por %p201, %p202
      %p204 = scmp.ne.s32.totalorder %s193, %s196
      %p205 = scmp.eq.s32.totalorder %s25, 2
      %p206 = por %p204, %p205
      %p207 = scmp.ne.s32.totalorder %s196, %s197
      %p208 = scmp.eq.s32.totalorder %s25, 0
      %p209 = por %p207, %p208
      %p210 = scmp.ne.s32.totalorder %s196, %s197
      %p211 = scmp.eq.s32.totalorder %s26, 2
      %p212 = por %p210, %p211
      %p214 = scmp.ne.s32.totalorder %s197, %s213
      %p215 = scmp.eq.s32.totalorder %s26, 0
      %p216 = por %p214, %p215
      %p217 = scmp.le.s32.totalorder 1, %s20
      %p218 = scmp.lt.s32.totalorder %s20, 4
      %p219 = pnand %p217, %p218
      %p220 = pneg %p219
      // Predicated region
      $region9: #{tpu_custom_call.1} parent=5 // pred_check
        _
      $region10: #{tpu_custom_call.1} parent=5 // pred_check_branch
        %222 = sbr.rel (%p219) target = $region12
      $region11: #{tpu_custom_call.1} parent=5 // pred_region
        %s223 = ssub.s32 %s20, 1
        // Predicated region
        $region13: #{tpu_custom_call.1} parent=11 // pred_check
          %p224 = pneg %p53
        $region14: #{tpu_custom_call.1} parent=11 // pred_check_branch
          %226 = sbr.rel (%p224) target = $region16
        $region15: #{tpu_custom_call.1} parent=11 // pred_region
          _
        $region16: #{tpu_custom_call.1} parent=11 // pred_fallthru
          _
        // Predicated region
        $region17: #{tpu_custom_call.1} parent=11 // pred_check
          %p227 = pneg %p79
        $region18: #{tpu_custom_call.1} parent=11 // pred_check_branch
          %229 = sbr.rel (%p227) target = $region20
        $region19: #{tpu_custom_call.1} parent=11 // pred_region
          %p230 = scmp.lt.s32.totalorder %s29, 0
          %s231 = scalar_select %p230, %s29, 0
          %s232 = smul.addr %s231, 8
          %s233 = scalar_lea.vmem %s1, %s232
        $region20: #{tpu_custom_call.1} parent=11 // pred_fallthru
          _
      $region12: #{tpu_custom_call.1} parent=5 // pred_fallthru
        _
      %p234 = scmp.lt.s32.totalorder %s20, 3
      // Predicated region
      $region21: #{tpu_custom_call.1} parent=5 // pred_check
        %p235 = pneg %p234
      $region22: #{tpu_custom_call.1} parent=5 // pred_check_branch
        %237 = sbr.rel (%p235) target = $region24
      $region23: #{tpu_custom_call.1} parent=5 // pred_region
        // Predicated region
        $region25: #{tpu_custom_call.1} parent=23 // pred_check
          %p238 = pneg %p99
        $region26: #{tpu_custom_call.1} parent=23 // pred_check_branch
          %240 = sbr.rel (%p238) target = $region28
        $region27: #{tpu_custom_call.1} parent=23 // pred_region
          %s241 = sand.u32 %s89, 1
          %s242 = scalar_lea.sflag [#allocation5], %s241
          %s243 = sand.u32 %s89, 1
          %s244 = smul.addr %s243, 64
          %s245 = scalar_lea.vmem [#allocation4], %s244
          %s247 = ssub.s32 1024, 1024
          %248 = vsyncadd %s242, %s247
          %s249 = smul.addr %s28, 16
          %s250 = smul.addr %s249, 64
          %s251 = scalar_lea.hbm %s2, %s250
          %s252 = sshll.u32 %s245, 4
          %s253 = int_to_ptr.vmem [resolvable:$true] %s252
          %258 = dma.hbm_to_vmem [thread:$0]  %s251, 1024, %s253, %s242, 64, 64, 4
        $region28: #{tpu_custom_call.1} parent=23 // pred_fallthru
          _
        // Predicated region
        $region29: #{tpu_custom_call.1} parent=23 // pred_check
          %p259 = pneg %p125
        $region30: #{tpu_custom_call.1} parent=23 // pred_check_branch
          %261 = sbr.rel (%p259) target = $region32
        $region31: #{tpu_custom_call.1} parent=23 // pred_region
          %s262 = sand.u32 %s115, 1
          %s263 = scalar_lea.sflag [#allocation8], %s262
          %s264 = sand.u32 %s115, 1
          %s265 = smul.addr %s264, 64
          %s266 = scalar_lea.vmem [#allocation7], %s265
          %s268 = ssub.s32 1024, 1024
          %269 = vsyncadd %s263, %s268
          %s270 = smul.addr %s28, 16
          %s271 = smul.addr %s270, 64
          %s272 = scalar_lea.hbm %s3, %s271
          %s273 = sshll.u32 %s266, 4
          %s274 = int_to_ptr.vmem [resolvable:$true] %s273
          %279 = dma.hbm_to_vmem [thread:$0]  %s272, 1024, %s274, %s263, 64, 64, 4
        $region32: #{tpu_custom_call.1} parent=23 // pred_fallthru
          _
        // Predicated region
        $region33: #{tpu_custom_call.1} parent=23 // pred_check
          %p280 = pneg %p151
        $region34: #{tpu_custom_call.1} parent=23 // pred_check_branch
          %282 = sbr.rel (%p280) target = $region36
        $region35: #{tpu_custom_call.1} parent=23 // pred_region
          %p283 = scmp.lt.s32.totalorder %s28, 2
          %s284 = scalar_select %p283, %s28, 2
          %s285 = scalar_lea.vmem %s4, %s284
        $region36: #{tpu_custom_call.1} parent=23 // pred_fallthru
          _
        // Predicated region
        $region37: #{tpu_custom_call.1} parent=23 // pred_check
          %p286 = pneg %p177
        $region38: #{tpu_custom_call.1} parent=23 // pred_check_branch
          %288 = sbr.rel (%p286) target = $region40
        $region39: #{tpu_custom_call.1} parent=23 // pred_region
          %p289 = scmp.lt.s32.totalorder %s28, 2
          %s290 = scalar_select %p289, %s28, 2
          %s291 = scalar_lea.vmem %s5, %s290
        $region40: #{tpu_custom_call.1} parent=23 // pred_fallthru
          _
      $region24: #{tpu_custom_call.1} parent=5 // pred_fallthru
        _
      %p292 = scmp.le.s32.totalorder 1, %s20
      %p293 = scmp.lt.s32.totalorder %s20, 4
      %p294 = pnand %p292, %p293
      %p295 = pneg %p294
      // Predicated region
      $region41: #{tpu_custom_call.1} parent=5 // pred_check
        _
      $region42: #{tpu_custom_call.1} parent=5 // pred_check_branch
        %297 = sbr.rel (%p294) target = $region44
      $region43: #{tpu_custom_call.1} parent=5 // pred_region
        %s298 = ssub.s32 %s20, 1
        %s299 = sand.u32 %s92, 1
        %s300 = scalar_lea.sflag [#allocation5], %s299
        %s301 = sand.u32 %s92, 1
        %s302 = smul.addr %s301, 64
        %s303 = scalar_lea.vmem [#allocation4], %s302
        // Predicated region
        $region45: #{tpu_custom_call.1} parent=43 // pred_check
          %p304 = pneg %p105
        $region46: #{tpu_custom_call.1} parent=43 // pred_check_branch
          %306 = sbr.rel (%p304) target = $region48
        $region47: #{tpu_custom_call.1} parent=43 // pred_region
          %307 = dma.done %s300, 1024
        $region48: #{tpu_custom_call.1} parent=43 // pred_fallthru
          _
        %s308 = sand.u32 %s118, 1
        %s309 = scalar_lea.sflag [#allocation8], %s308
        %s310 = sand.u32 %s118, 1
        %s311 = smul.addr %s310, 64
        %s312 = scalar_lea.vmem [#allocation7], %s311
        // Predicated region
        $region49: #{tpu_custom_call.1} parent=43 // pred_check
          %p313 = pneg %p131
        $region50: #{tpu_custom_call.1} parent=43 // pred_check_branch
          %315 = sbr.rel (%p313) target = $region52
        $region51: #{tpu_custom_call.1} parent=43 // pred_region
          %316 = dma.done %s309, 1024
        $region52: #{tpu_custom_call.1} parent=43 // pred_fallthru
          _
        %p317 = pneg %p53
        %p318 = pneg %p50
        %p319 = scmp.lt.s32.totalorder %s29, 0
        %s320 = scalar_select %p319, %s29, 0
        %s321 = smul.addr %s320, 8
        %s322 = scalar_lea.vmem %s1, %s321
        %p323 = pneg %p79
        %p324 = pneg %p76
        %s325 = sand.u32 %s92, 1
        %s326 = scalar_lea.sflag [#allocation5], %s325
        %s327 = sand.u32 %s92, 1
        %s328 = smul.addr %s327, 64
        %s329 = scalar_lea.vmem [#allocation4], %s328
        %p330 = pneg %p105
        %p331 = pneg %p102
        %s332 = sand.u32 %s118, 1
        %s333 = scalar_lea.sflag [#allocation8], %s332
        %s334 = sand.u32 %s118, 1
        %s335 = smul.addr %s334, 64
        %s336 = scalar_lea.vmem [#allocation7], %s335
        %p337 = pneg %p131
        %p338 = pneg %p128
        %p339 = scmp.lt.s32.totalorder %s30, 2
        %s340 = scalar_select %p339, %s30, 2
        %s341 = scalar_lea.vmem %s4, %s340
        %p342 = pneg %p157
        %p343 = pneg %p154
        %p344 = scmp.lt.s32.totalorder %s30, 2
        %s345 = scalar_select %p344, %s30, 2
        %s346 = scalar_lea.vmem %s5, %s345
        %p347 = pneg %p183
        %p348 = pneg %p180
        %p349 = pneg %p209
        %p350 = pneg %p206
        %p351 = scmp.lt.s32.totalorder %s29, 0
        %s352 = scalar_select %p351, %s29, 0
        %s353 = smul.addr %s352, 8
        %s354 = scalar_lea.vmem %s1, %s353
        %p355 = scmp.lt.s32.totalorder %s30, 2
        %s356 = scalar_select %p355, %s30, 2
        %s357 = scalar_lea.vmem %s4, %s356
        %p358 = scmp.lt.s32.totalorder %s30, 2
        %s359 = scalar_select %p358, %s30, 2
        %s360 = scalar_lea.vmem %s5, %s359
        %p362 = scmp.eq.s32.totalorder %s30, 0
        // Predicated region
        $region53: #{tpu_custom_call.1} parent=43 // pred_check
          %p363 = pneg %p362
        $region54: #{tpu_custom_call.1} parent=43 // pred_check_branch
          %365 = sbr.rel (%p363) target = $region56
        $region55: #{tpu_custom_call.1} parent=43 // pred_region
          %v366 = vld [vmem:[%s354] sm:$0xff]
          %367 = vst [vmem:[#allocation2] sm:$0xff] %v366
        $region56: #{tpu_custom_call.1} parent=43 // pred_fallthru
          _
        %s368 = sld [smem:[#allocation3]]
        %s369 = sshra.s32 %s368, 16
        %s370 = sand.u32 %s369, 65535
        %s371 = sxor.u32 %s368, %s370
        %s372 = smul.u32 %s371, 2246822507
        %s373 = sshra.s32 %s372, 13
        %s374 = sand.u32 %s373, 524287
        %s375 = sxor.u32 %s372, %s374
        %s376 = smul.u32 %s375, 3266489909
        %s377 = sshra.s32 %s376, 16
        %s378 = sand.u32 %s377, 65535
        %s379 = sxor.u32 %s376, %s378
        %s380 = smul.u32 %s30, 16512
        %s381 = sadd.s32 %s379, %s380
        %s382 = sadd.s32 %s381, 16384
        %v383 = vlaneseq
        %v384 = vshrl.u32 %v383, 7
        %v385 = vadd.s32 %v384, 8
        %v386 = vadd.s32 %v384, 16
        %v387 = vadd.s32 %v384, 24
        %v388 = vadd.s32 %v384, 32
        %v389 = vadd.s32 %v384, 40
        %v390 = vadd.s32 %v384, 48
        %v391 = vadd.s32 %v384, 56
        %v392 = vadd.s32 %v384, 64
        %v393 = vadd.s32 %v384, 72
        %v394 = vadd.s32 %v384, 80
        %v395 = vadd.s32 %v384, 88
        %v396 = vadd.s32 %v384, 96
        %v397 = vadd.s32 %v384, 104
        %v398 = vadd.s32 %v384, 112
        %v399 = vadd.s32 %v384, 120
        %v400 = vlaneseq
        %v401 = vand.u32 %v400, 127
        %v402 = vmul.u32 %v384, 128
        %v403 = vmul.u32 %v385, 128
        %v404 = vmul.u32 %v386, 128
        %v405 = vmul.u32 %v387, 128
        %v406 = vmul.u32 %v388, 128
        %v407 = vmul.u32 %v389, 128
        %v408 = vmul.u32 %v390, 128
        %v409 = vmul.u32 %v391, 128
        %v410 = vmul.u32 %v392, 128
        %v411 = vmul.u32 %v393, 128
        %v412 = vmul.u32 %v394, 128
        %v413 = vmul.u32 %v395, 128
        %v414 = vmul.u32 %v396, 128
        %v415 = vmul.u32 %v397, 128
        %v416 = vmul.u32 %v398, 128
        %v417 = vmul.u32 %v399, 128
        %v418 = vadd.s32 %v402, %v401
        %v419 = vadd.s32 %v403, %v401
        %v420 = vadd.s32 %v404, %v401
        %v421 = vadd.s32 %v405, %v401
        %v422 = vadd.s32 %v406, %v401
        %v423 = vadd.s32 %v407, %v401
        %v424 = vadd.s32 %v408, %v401
        %v425 = vadd.s32 %v409, %v401
        %v426 = vadd.s32 %v410, %v401
        %v427 = vadd.s32 %v411, %v401
        %v428 = vadd.s32 %v412, %v401
        %v429 = vadd.s32 %v413, %v401
        %v430 = vadd.s32 %v414, %v401
        %v431 = vadd.s32 %v415, %v401
        %v432 = vadd.s32 %v416, %v401
        %v433 = vadd.s32 %v417, %v401
        %v434 = vstv %s381
        %v435 = vadd.s32 %v418, %v434
        %v436 = vadd.s32 %v419, %v434
        %v437 = vadd.s32 %v420, %v434
        %v438 = vadd.s32 %v421, %v434
        %v439 = vadd.s32 %v422, %v434
        %v440 = vadd.s32 %v423, %v434
        %v441 = vadd.s32 %v424, %v434
        %v442 = vadd.s32 %v425, %v434
        %v443 = vadd.s32 %v426, %v434
        %v444 = vadd.s32 %v427, %v434
        %v445 = vadd.s32 %v428, %v434
        %v446 = vadd.s32 %v429, %v434
        %v447 = vadd.s32 %v430, %v434
        %v448 = vadd.s32 %v431, %v434
        %v449 = vadd.s32 %v432, %v434
        %v450 = vadd.s32 %v433, %v434
        %v451 = vshra.s32 %v435, 16
        %v452 = vshra.s32 %v436, 16
        %v453 = vshra.s32 %v437, 16
        %v454 = vshra.s32 %v438, 16
        %v455 = vshra.s32 %v439, 16
        %v456 = vshra.s32 %v440, 16
        %v457 = vshra.s32 %v441, 16
        %v458 = vshra.s32 %v442, 16
        %v459 = vshra.s32 %v443, 16
        %v460 = vshra.s32 %v444, 16
        %v461 = vshra.s32 %v445, 16
        %v462 = vshra.s32 %v446, 16
        %v463 = vshra.s32 %v447, 16
        %v464 = vshra.s32 %v448, 16
        %v465 = vshra.s32 %v449, 16
        %v466 = vshra.s32 %v450, 16
        %v467 = vand.u32 %v451, 65535
        %v468 = vand.u32 %v452, 65535
        %v469 = vand.u32 %v453, 65535
        %v470 = vand.u32 %v454, 65535
        %v471 = vand.u32 %v455, 65535
        %v472 = vand.u32 %v456, 65535
        %v473 = vand.u32 %v457, 65535
        %v474 = vand.u32 %v458, 65535
        %v475 = vand.u32 %v459, 65535
        %v476 = vand.u32 %v460, 65535
        %v477 = vand.u32 %v461, 65535
        %v478 = vand.u32 %v462, 65535
        %v479 = vand.u32 %v463, 65535
        %v480 = vand.u32 %v464, 65535
        %v481 = vand.u32 %v465, 65535
        %v482 = vand.u32 %v466, 65535
        %v483 = vxor.u32 %v435, %v467
        %v484 = vxor.u32 %v436, %v468
        %v485 = vxor.u32 %v437, %v469
        %v486 = vxor.u32 %v438, %v470
        %v487 = vxor.u32 %v439, %v471
        %v488 = vxor.u32 %v440, %v472
        %v489 = vxor.u32 %v441, %v473
        %v490 = vxor.u32 %v442, %v474
        %v491 = vxor.u32 %v443, %v475
        %v492 = vxor.u32 %v444, %v476
        %v493 = vxor.u32 %v445, %v477
        %v494 = vxor.u32 %v446, %v478
        %v495 = vxor.u32 %v447, %v479
        %v496 = vxor.u32 %v448, %v480
        %v497 = vxor.u32 %v449, %v481
        %v498 = vxor.u32 %v450, %v482
        %v499 = vmul.u32 %v483, 2246822507
        %v500 = vmul.u32 %v484, 2246822507
        %v501 = vmul.u32 %v485, 2246822507
        %v502 = vmul.u32 %v486, 2246822507
        %v503 = vmul.u32 %v487, 2246822507
        %v504 = vmul.u32 %v488, 2246822507
        %v505 = vmul.u32 %v489, 2246822507
        %v506 = vmul.u32 %v490, 2246822507
        %v507 = vmul.u32 %v491, 2246822507
        %v508 = vmul.u32 %v492, 2246822507
        %v509 = vmul.u32 %v493, 2246822507
        %v510 = vmul.u32 %v494, 2246822507
        %v511 = vmul.u32 %v495, 2246822507
        %v512 = vmul.u32 %v496, 2246822507
        %v513 = vmul.u32 %v497, 2246822507
        %v514 = vmul.u32 %v498, 2246822507
        %v515 = vshra.s32 %v499, 13
        %v516 = vshra.s32 %v500, 13
        %v517 = vshra.s32 %v501, 13
        %v518 = vshra.s32 %v502, 13
        %v519 = vshra.s32 %v503, 13
        %v520 = vshra.s32 %v504, 13
        %v521 = vshra.s32 %v505, 13
        %v522 = vshra.s32 %v506, 13
        %v523 = vshra.s32 %v507, 13
        %v524 = vshra.s32 %v508, 13
        %v525 = vshra.s32 %v509, 13
        %v526 = vshra.s32 %v510, 13
        %v527 = vshra.s32 %v511, 13
        %v528 = vshra.s32 %v512, 13
        %v529 = vshra.s32 %v513, 13
        %v530 = vshra.s32 %v514, 13
        %v531 = vand.u32 %v515, 524287
        %v532 = vand.u32 %v516, 524287
        %v533 = vand.u32 %v517, 524287
        %v534 = vand.u32 %v518, 524287
        %v535 = vand.u32 %v519, 524287
        %v536 = vand.u32 %v520, 524287
        %v537 = vand.u32 %v521, 524287
        %v538 = vand.u32 %v522, 524287
        %v539 = vand.u32 %v523, 524287
        %v540 = vand.u32 %v524, 524287
        %v541 = vand.u32 %v525, 524287
        %v542 = vand.u32 %v526, 524287
        %v543 = vand.u32 %v527, 524287
        %v544 = vand.u32 %v528, 524287
        %v545 = vand.u32 %v529, 524287
        %v546 = vand.u32 %v530, 524287
        %v547 = vxor.u32 %v499, %v531
        %v548 = vxor.u32 %v500, %v532
        %v549 = vxor.u32 %v501, %v533
        %v550 = vxor.u32 %v502, %v534
        %v551 = vxor.u32 %v503, %v535
        %v552 = vxor.u32 %v504, %v536
        %v553 = vxor.u32 %v505, %v537
        %v554 = vxor.u32 %v506, %v538
        %v555 = vxor.u32 %v507, %v539
        %v556 = vxor.u32 %v508, %v540
        %v557 = vxor.u32 %v509, %v541
        %v558 = vxor.u32 %v510, %v542
        %v559 = vxor.u32 %v511, %v543
        %v560 = vxor.u32 %v512, %v544
        %v561 = vxor.u32 %v513, %v545
        %v562 = vxor.u32 %v514, %v546
        %v563 = vmul.u32 %v547, 3266489909
        %v564 = vmul.u32 %v548, 3266489909
        %v565 = vmul.u32 %v549, 3266489909
        %v566 = vmul.u32 %v550, 3266489909
        %v567 = vmul.u32 %v551, 3266489909
        %v568 = vmul.u32 %v552, 3266489909
        %v569 = vmul.u32 %v553, 3266489909
        %v570 = vmul.u32 %v554, 3266489909
        %v571 = vmul.u32 %v555, 3266489909
        %v572 = vmul.u32 %v556, 3266489909
        %v573 = vmul.u32 %v557, 3266489909
        %v574 = vmul.u32 %v558, 3266489909
        %v575 = vmul.u32 %v559, 3266489909
        %v576 = vmul.u32 %v560, 3266489909
        %v577 = vmul.u32 %v561, 3266489909
        %v578 = vmul.u32 %v562, 3266489909
        %v579 = vshra.s32 %v563, 16
        %v580 = vshra.s32 %v564, 16
        %v581 = vshra.s32 %v565, 16
        %v582 = vshra.s32 %v566, 16
        %v583 = vshra.s32 %v567, 16
        %v584 = vshra.s32 %v568, 16
        %v585 = vshra.s32 %v569, 16
        %v586 = vshra.s32 %v570, 16
        %v587 = vshra.s32 %v571, 16
        %v588 = vshra.s32 %v572, 16
        %v589 = vshra.s32 %v573, 16
        %v590 = vshra.s32 %v574, 16
        %v591 = vshra.s32 %v575, 16
        %v592 = vshra.s32 %v576, 16
        %v593 = vshra.s32 %v577, 16
        %v594 = vshra.s32 %v578, 16
        %v595 = vand.u32 %v579, 65535
        %v596 = vand.u32 %v580, 65535
        %v597 = vand.u32 %v581, 65535
        %v598 = vand.u32 %v582, 65535
        %v599 = vand.u32 %v583, 65535
        %v600 = vand.u32 %v584, 65535
        %v601 = vand.u32 %v585, 65535
        %v602 = vand.u32 %v586, 65535
        %v603 = vand.u32 %v587, 65535
        %v604 = vand.u32 %v588, 65535
        %v605 = vand.u32 %v589, 65535
        %v606 = vand.u32 %v590, 65535
        %v607 = vand.u32 %v591, 65535
        %v608 = vand.u32 %v592, 65535
        %v609 = vand.u32 %v593, 65535
        %v610 = vand.u32 %v594, 65535
        %v611 = vxor.u32 %v563, %v595
        %v612 = vxor.u32 %v564, %v596
        %v613 = vxor.u32 %v565, %v597
        %v614 = vxor.u32 %v566, %v598
        %v615 = vxor.u32 %v567, %v599
        %v616 = vxor.u32 %v568, %v600
        %v617 = vxor.u32 %v569, %v601
        %v618 = vxor.u32 %v570, %v602
        %v619 = vxor.u32 %v571, %v603
        %v620 = vxor.u32 %v572, %v604
        %v621 = vxor.u32 %v573, %v605
        %v622 = vxor.u32 %v574, %v606
        %v623 = vxor.u32 %v575, %v607
        %v624 = vxor.u32 %v576, %v608
        %v625 = vxor.u32 %v577, %v609
        %v626 = vxor.u32 %v578, %v610
        %v627 = vand.u32 %v611, 8388607
        %v628 = vand.u32 %v612, 8388607
        %v629 = vand.u32 %v613, 8388607
        %v630 = vand.u32 %v614, 8388607
        %v631 = vand.u32 %v615, 8388607
        %v632 = vand.u32 %v616, 8388607
        %v633 = vand.u32 %v617, 8388607
        %v634 = vand.u32 %v618, 8388607
        %v635 = vand.u32 %v619, 8388607
        %v636 = vand.u32 %v620, 8388607
        %v637 = vand.u32 %v621, 8388607
        %v638 = vand.u32 %v622, 8388607
        %v639 = vand.u32 %v623, 8388607
        %v640 = vand.u32 %v624, 8388607
        %v641 = vand.u32 %v625, 8388607
        %v642 = vand.u32 %v626, 8388607
        %v643 = vcvt.s32.f32 %v627
        %v644 = vcvt.s32.f32 %v628
        %v645 = vcvt.s32.f32 %v629
        %v646 = vcvt.s32.f32 %v630
        %v647 = vcvt.s32.f32 %v631
        %v648 = vcvt.s32.f32 %v632
        %v649 = vcvt.s32.f32 %v633
        %v650 = vcvt.s32.f32 %v634
        %v651 = vcvt.s32.f32 %v635
        %v652 = vcvt.s32.f32 %v636
        %v653 = vcvt.s32.f32 %v637
        %v654 = vcvt.s32.f32 %v638
        %v655 = vcvt.s32.f32 %v639
        %v656 = vcvt.s32.f32 %v640
        %v657 = vcvt.s32.f32 %v641
        %v658 = vcvt.s32.f32 %v642
        %v659 = vadd.f32 %v643, 0.5
        %v660 = vadd.f32 %v644, 0.5
        %v661 = vadd.f32 %v645, 0.5
        %v662 = vadd.f32 %v646, 0.5
        %v663 = vadd.f32 %v647, 0.5
        %v664 = vadd.f32 %v648, 0.5
        %v665 = vadd.f32 %v649, 0.5
        %v666 = vadd.f32 %v650, 0.5
        %v667 = vadd.f32 %v651, 0.5
        %v668 = vadd.f32 %v652, 0.5
        %v669 = vadd.f32 %v653, 0.5
        %v670 = vadd.f32 %v654, 0.5
        %v671 = vadd.f32 %v655, 0.5
        %v672 = vadd.f32 %v656, 0.5
        %v673 = vadd.f32 %v657, 0.5
        %v674 = vadd.f32 %v658, 0.5
        %v675 = vmul.f32 %v659, 1.1920929e-07
        %v676 = vmul.f32 %v660, 1.1920929e-07
        %v677 = vmul.f32 %v661, 1.1920929e-07
        %v678 = vmul.f32 %v662, 1.1920929e-07
        %v679 = vmul.f32 %v663, 1.1920929e-07
        %v680 = vmul.f32 %v664, 1.1920929e-07
        %v681 = vmul.f32 %v665, 1.1920929e-07
        %v682 = vmul.f32 %v666, 1.1920929e-07
        %v683 = vmul.f32 %v667, 1.1920929e-07
        %v684 = vmul.f32 %v668, 1.1920929e-07
        %v685 = vmul.f32 %v669, 1.1920929e-07
        %v686 = vmul.f32 %v670, 1.1920929e-07
        %v687 = vmul.f32 %v671, 1.1920929e-07
        %v688 = vmul.f32 %v672, 1.1920929e-07
        %v689 = vmul.f32 %v673, 1.1920929e-07
        %v690 = vmul.f32 %v674, 1.1920929e-07
        %v691 = vsub.f32 %v675, 0.5
        %v692 = vsub.f32 %v676, 0.5
        %v693 = vsub.f32 %v677, 0.5
        %v694 = vsub.f32 %v678, 0.5
        %v695 = vsub.f32 %v679, 0.5
        %v696 = vsub.f32 %v680, 0.5
        %v697 = vsub.f32 %v681, 0.5
        %v698 = vsub.f32 %v682, 0.5
        %v699 = vsub.f32 %v683, 0.5
        %v700 = vsub.f32 %v684, 0.5
        %v701 = vsub.f32 %v685, 0.5
        %v702 = vsub.f32 %v686, 0.5
        %v703 = vsub.f32 %v687, 0.5
        %v704 = vsub.f32 %v688, 0.5
        %v705 = vsub.f32 %v689, 0.5
        %v706 = vsub.f32 %v690, 0.5
        %v707 = vmul.f32 %v691, %v691
        %v708 = vmul.f32 %v692, %v692
        %v709 = vmul.f32 %v693, %v693
        %v710 = vmul.f32 %v694, %v694
        %v711 = vmul.f32 %v695, %v695
        %v712 = vmul.f32 %v696, %v696
        %v713 = vmul.f32 %v697, %v697
        %v714 = vmul.f32 %v698, %v698
        %v715 = vmul.f32 %v699, %v699
        %v716 = vmul.f32 %v700, %v700
        %v717 = vmul.f32 %v701, %v701
        %v718 = vmul.f32 %v702, %v702
        %v719 = vmul.f32 %v703, %v703
        %v720 = vmul.f32 %v704, %v704
        %v721 = vmul.f32 %v705, %v705
        %v722 = vmul.f32 %v706, %v706
        %v723 = vmul.f32 %v707, -39.69683
        %v724 = vmul.f32 %v708, -39.69683
        %v725 = vmul.f32 %v709, -39.69683
        %v726 = vmul.f32 %v710, -39.69683
        %v727 = vmul.f32 %v711, -39.69683
        %v728 = vmul.f32 %v712, -39.69683
        %v729 = vmul.f32 %v713, -39.69683
        %v730 = vmul.f32 %v714, -39.69683
        %v731 = vmul.f32 %v715, -39.69683
        %v732 = vmul.f32 %v716, -39.69683
        %v733 = vmul.f32 %v717, -39.69683
        %v734 = vmul.f32 %v718, -39.69683
        %v735 = vmul.f32 %v719, -39.69683
        %v736 = vmul.f32 %v720, -39.69683
        %v737 = vmul.f32 %v721, -39.69683
        %v738 = vmul.f32 %v722, -39.69683
        %v739 = vadd.f32 %v723, 220.9461
        %v740 = vadd.f32 %v724, 220.9461
        %v741 = vadd.f32 %v725, 220.9461
        %v742 = vadd.f32 %v726, 220.9461
        %v743 = vadd.f32 %v727, 220.9461
        %v744 = vadd.f32 %v728, 220.9461
        %v745 = vadd.f32 %v729, 220.9461
        %v746 = vadd.f32 %v730, 220.9461
        %v747 = vadd.f32 %v731, 220.9461
        %v748 = vadd.f32 %v732, 220.9461
        %v749 = vadd.f32 %v733, 220.9461
        %v750 = vadd.f32 %v734, 220.9461
        %v751 = vadd.f32 %v735, 220.9461
        %v752 = vadd.f32 %v736, 220.9461
        %v753 = vadd.f32 %v737, 220.9461
        %v754 = vadd.f32 %v738, 220.9461
        %v755 = vmul.f32 %v739, %v707
        %v756 = vmul.f32 %v740, %v708
        %v757 = vmul.f32 %v741, %v709
        %v758 = vmul.f32 %v742, %v710
        %v759 = vmul.f32 %v743, %v711
        %v760 = vmul.f32 %v744, %v712
        %v761 = vmul.f32 %v745, %v713
        %v762 = vmul.f32 %v746, %v714
        %v763 = vmul.f32 %v747, %v715
        %v764 = vmul.f32 %v748, %v716
        %v765 = vmul.f32 %v749, %v717
        %v766 = vmul.f32 %v750, %v718
        %v767 = vmul.f32 %v751, %v719
        %v768 = vmul.f32 %v752, %v720
        %v769 = vmul.f32 %v753, %v721
        %v770 = vmul.f32 %v754, %v722
        %v771 = vadd.f32 %v755, -275.9285
        %v772 = vadd.f32 %v756, -275.9285
        %v773 = vadd.f32 %v757, -275.9285
        %v774 = vadd.f32 %v758, -275.9285
        %v775 = vadd.f32 %v759, -275.9285
        %v776 = vadd.f32 %v760, -275.9285
        %v777 = vadd.f32 %v761, -275.9285
        %v778 = vadd.f32 %v762, -275.9285
        %v779 = vadd.f32 %v763, -275.9285
        %v780 = vadd.f32 %v764, -275.9285
        %v781 = vadd.f32 %v765, -275.9285
        %v782 = vadd.f32 %v766, -275.9285
        %v783 = vadd.f32 %v767, -275.9285
        %v784 = vadd.f32 %v768, -275.9285
        %v785 = vadd.f32 %v769, -275.9285
        %v786 = vadd.f32 %v770, -275.9285
        %v787 = vmul.f32 %v771, %v707
        %v788 = vmul.f32 %v772, %v708
        %v789 = vmul.f32 %v773, %v709
        %v790 = vmul.f32 %v774, %v710
        %v791 = vmul.f32 %v775, %v711
        %v792 = vmul.f32 %v776, %v712
        %v793 = vmul.f32 %v777, %v713
        %v794 = vmul.f32 %v778, %v714
        %v795 = vmul.f32 %v779, %v715
        %v796 = vmul.f32 %v780, %v716
        %v797 = vmul.f32 %v781, %v717
        %v798 = vmul.f32 %v782, %v718
        %v799 = vmul.f32 %v783, %v719
        %v800 = vmul.f32 %v784, %v720
        %v801 = vmul.f32 %v785, %v721
        %v802 = vmul.f32 %v786, %v722
        %v803 = vadd.f32 %v787, 138.35776
        %v804 = vadd.f32 %v788, 138.35776
        %v805 = vadd.f32 %v789, 138.35776
        %v806 = vadd.f32 %v790, 138.35776
        %v807 = vadd.f32 %v791, 138.35776
        %v808 = vadd.f32 %v792, 138.35776
        %v809 = vadd.f32 %v793, 138.35776
        %v810 = vadd.f32 %v794, 138.35776
        %v811 = vadd.f32 %v795, 138.35776
        %v812 = vadd.f32 %v796, 138.35776
        %v813 = vadd.f32 %v797, 138.35776
        %v814 = vadd.f32 %v798, 138.35776
        %v815 = vadd.f32 %v799, 138.35776
        %v816 = vadd.f32 %v800, 138.35776
        %v817 = vadd.f32 %v801, 138.35776
        %v818 = vadd.f32 %v802, 138.35776
        %v819 = vmul.f32 %v803, %v707
        %v820 = vmul.f32 %v804, %v708
        %v821 = vmul.f32 %v805, %v709
        %v822 = vmul.f32 %v806, %v710
        %v823 = vmul.f32 %v807, %v711
        %v824 = vmul.f32 %v808, %v712
        %v825 = vmul.f32 %v809, %v713
        %v826 = vmul.f32 %v810, %v714
        %v827 = vmul.f32 %v811, %v715
        %v828 = vmul.f32 %v812, %v716
        %v829 = vmul.f32 %v813, %v717
        %v830 = vmul.f32 %v814, %v718
        %v831 = vmul.f32 %v815, %v719
        %v832 = vmul.f32 %v816, %v720
        %v833 = vmul.f32 %v817, %v721
        %v834 = vmul.f32 %v818, %v722
        %v835 = vadd.f32 %v819, -30.664799
        %v836 = vadd.f32 %v820, -30.664799
        %v837 = vadd.f32 %v821, -30.664799
        %v838 = vadd.f32 %v822, -30.664799
        %v839 = vadd.f32 %v823, -30.664799
        %v840 = vadd.f32 %v824, -30.664799
        %v841 = vadd.f32 %v825, -30.664799
        %v842 = vadd.f32 %v826, -30.664799
        %v843 = vadd.f32 %v827, -30.664799
        %v844 = vadd.f32 %v828, -30.664799
        %v845 = vadd.f32 %v829, -30.664799
        %v846 = vadd.f32 %v830, -30.664799
        %v847 = vadd.f32 %v831, -30.664799
        %v848 = vadd.f32 %v832, -30.664799
        %v849 = vadd.f32 %v833, -30.664799
        %v850 = vadd.f32 %v834, -30.664799
        %v851 = vmul.f32 %v835, %v707
        %v852 = vmul.f32 %v836, %v708
        %v853 = vmul.f32 %v837, %v709
        %v854 = vmul.f32 %v838, %v710
        %v855 = vmul.f32 %v839, %v711
        %v856 = vmul.f32 %v840, %v712
        %v857 = vmul.f32 %v841, %v713
        %v858 = vmul.f32 %v842, %v714
        %v859 = vmul.f32 %v843, %v715
        %v860 = vmul.f32 %v844, %v716
        %v861 = vmul.f32 %v845, %v717
        %v862 = vmul.f32 %v846, %v718
        %v863 = vmul.f32 %v847, %v719
        %v864 = vmul.f32 %v848, %v720
        %v865 = vmul.f32 %v849, %v721
        %v866 = vmul.f32 %v850, %v722
        %v867 = vadd.f32 %v851, 2.5066283
        %v868 = vadd.f32 %v852, 2.5066283
        %v869 = vadd.f32 %v853, 2.5066283
        %v870 = vadd.f32 %v854, 2.5066283
        %v871 = vadd.f32 %v855, 2.5066283
        %v872 = vadd.f32 %v856, 2.5066283
        %v873 = vadd.f32 %v857, 2.5066283
        %v874 = vadd.f32 %v858, 2.5066283
        %v875 = vadd.f32 %v859, 2.5066283
        %v876 = vadd.f32 %v860, 2.5066283
        %v877 = vadd.f32 %v861, 2.5066283
        %v878 = vadd.f32 %v862, 2.5066283
        %v879 = vadd.f32 %v863, 2.5066283
        %v880 = vadd.f32 %v864, 2.5066283
        %v881 = vadd.f32 %v865, 2.5066283
        %v882 = vadd.f32 %v866, 2.5066283
        %v883 = vmul.f32 %v867, %v691
        %v884 = vmul.f32 %v868, %v692
        %v885 = vmul.f32 %v869, %v693
        %v886 = vmul.f32 %v870, %v694
        %v887 = vmul.f32 %v871, %v695
        %v888 = vmul.f32 %v872, %v696
        %v889 = vmul.f32 %v873, %v697
        %v890 = vmul.f32 %v874, %v698
        %v891 = vmul.f32 %v875, %v699
        %v892 = vmul.f32 %v876, %v700
        %v893 = vmul.f32 %v877, %v701
        %v894 = vmul.f32 %v878, %v702
        %v895 = vmul.f32 %v879, %v703
        %v896 = vmul.f32 %v880, %v704
        %v897 = vmul.f32 %v881, %v705
        %v898 = vmul.f32 %v882, %v706
        %v899 = vmul.f32 %v707, -54.476097
        %v900 = vmul.f32 %v708, -54.476097
        %v901 = vmul.f32 %v709, -54.476097
        %v902 = vmul.f32 %v710, -54.476097
        %v903 = vmul.f32 %v711, -54.476097
        %v904 = vmul.f32 %v712, -54.476097
        %v905 = vmul.f32 %v713, -54.476097
        %v906 = vmul.f32 %v714, -54.476097
        %v907 = vmul.f32 %v715, -54.476097
        %v908 = vmul.f32 %v716, -54.476097
        %v909 = vmul.f32 %v717, -54.476097
        %v910 = vmul.f32 %v718, -54.476097
        %v911 = vmul.f32 %v719, -54.476097
        %v912 = vmul.f32 %v720, -54.476097
        %v913 = vmul.f32 %v721, -54.476097
        %v914 = vmul.f32 %v722, -54.476097
        %v915 = vadd.f32 %v899, 161.58583
        %v916 = vadd.f32 %v900, 161.58583
        %v917 = vadd.f32 %v901, 161.58583
        %v918 = vadd.f32 %v902, 161.58583
        %v919 = vadd.f32 %v903, 161.58583
        %v920 = vadd.f32 %v904, 161.58583
        %v921 = vadd.f32 %v905, 161.58583
        %v922 = vadd.f32 %v906, 161.58583
        %v923 = vadd.f32 %v907, 161.58583
        %v924 = vadd.f32 %v908, 161.58583
        %v925 = vadd.f32 %v909, 161.58583
        %v926 = vadd.f32 %v910, 161.58583
        %v927 = vadd.f32 %v911, 161.58583
        %v928 = vadd.f32 %v912, 161.58583
        %v929 = vadd.f32 %v913, 161.58583
        %v930 = vadd.f32 %v914, 161.58583
        %v931 = vmul.f32 %v915, %v707
        %v932 = vmul.f32 %v916, %v708
        %v933 = vmul.f32 %v917, %v709
        %v934 = vmul.f32 %v918, %v710
        %v935 = vmul.f32 %v919, %v711
        %v936 = vmul.f32 %v920, %v712
        %v937 = vmul.f32 %v921, %v713
        %v938 = vmul.f32 %v922, %v714
        %v939 = vmul.f32 %v923, %v715
        %v940 = vmul.f32 %v924, %v716
        %v941 = vmul.f32 %v925, %v717
        %v942 = vmul.f32 %v926, %v718
        %v943 = vmul.f32 %v927, %v719
        %v944 = vmul.f32 %v928, %v720
        %v945 = vmul.f32 %v929, %v721
        %v946 = vmul.f32 %v930, %v722
        %v947 = vadd.f32 %v931, -155.69897
        %v948 = vadd.f32 %v932, -155.69897
        %v949 = vadd.f32 %v933, -155.69897
        %v950 = vadd.f32 %v934, -155.69897
        %v951 = vadd.f32 %v935, -155.69897
        %v952 = vadd.f32 %v936, -155.69897
        %v953 = vadd.f32 %v937, -155.69897
        %v954 = vadd.f32 %v938, -155.69897
        %v955 = vadd.f32 %v939, -155.69897
        %v956 = vadd.f32 %v940, -155.69897
        %v957 = vadd.f32 %v941, -155.69897
        %v958 = vadd.f32 %v942, -155.69897
        %v959 = vadd.f32 %v943, -155.69897
        %v960 = vadd.f32 %v944, -155.69897
        %v961 = vadd.f32 %v945, -155.69897
        %v962 = vadd.f32 %v946, -155.69897
        %v963 = vmul.f32 %v947, %v707
        %v964 = vmul.f32 %v948, %v708
        %v965 = vmul.f32 %v949, %v709
        %v966 = vmul.f32 %v950, %v710
        %v967 = vmul.f32 %v951, %v711
        %v968 = vmul.f32 %v952, %v712
        %v969 = vmul.f32 %v953, %v713
        %v970 = vmul.f32 %v954, %v714
        %v971 = vmul.f32 %v955, %v715
        %v972 = vmul.f32 %v956, %v716
        %v973 = vmul.f32 %v957, %v717
        %v974 = vmul.f32 %v958, %v718
        %v975 = vmul.f32 %v959, %v719
        %v976 = vmul.f32 %v960, %v720
        %v977 = vmul.f32 %v961, %v721
        %v978 = vmul.f32 %v962, %v722
        %v979 = vadd.f32 %v963, 66.801315
        %v980 = vadd.f32 %v964, 66.801315
        %v981 = vadd.f32 %v965, 66.801315
        %v982 = vadd.f32 %v966, 66.801315
        %v983 = vadd.f32 %v967, 66.801315
        %v984 = vadd.f32 %v968, 66.801315
        %v985 = vadd.f32 %v969, 66.801315
        %v986 = vadd.f32 %v970, 66.801315
        %v987 = vadd.f32 %v971, 66.801315
        %v988 = vadd.f32 %v972, 66.801315
        %v989 = vadd.f32 %v973, 66.801315
        %v990 = vadd.f32 %v974, 66.801315
        %v991 = vadd.f32 %v975, 66.801315
        %v992 = vadd.f32 %v976, 66.801315
        %v993 = vadd.f32 %v977, 66.801315
        %v994 = vadd.f32 %v978, 66.801315
        %v995 = vmul.f32 %v979, %v707
        %v996 = vmul.f32 %v980, %v708
        %v997 = vmul.f32 %v981, %v709
        %v998 = vmul.f32 %v982, %v710
        %v999 = vmul.f32 %v983, %v711
        %v1000 = vmul.f32 %v984, %v712
        %v1001 = vmul.f32 %v985, %v713
        %v1002 = vmul.f32 %v986, %v714
        %v1003 = vmul.f32 %v987, %v715
        %v1004 = vmul.f32 %v988, %v716
        %v1005 = vmul.f32 %v989, %v717
        %v1006 = vmul.f32 %v990, %v718
        %v1007 = vmul.f32 %v991, %v719
        %v1008 = vmul.f32 %v992, %v720
        %v1009 = vmul.f32 %v993, %v721
        %v1010 = vmul.f32 %v994, %v722
        %v1011 = vadd.f32 %v995, -13.280682
        %v1012 = vadd.f32 %v996, -13.280682
        %v1013 = vadd.f32 %v997, -13.280682
        %v1014 = vadd.f32 %v998, -13.280682
        %v1015 = vadd.f32 %v999, -13.280682
        %v1016 = vadd.f32 %v1000, -13.280682
        %v1017 = vadd.f32 %v1001, -13.280682
        %v1018 = vadd.f32 %v1002, -13.280682
        %v1019 = vadd.f32 %v1003, -13.280682
        %v1020 = vadd.f32 %v1004, -13.280682
        %v1021 = vadd.f32 %v1005, -13.280682
        %v1022 = vadd.f32 %v1006, -13.280682
        %v1023 = vadd.f32 %v1007, -13.280682
        %v1024 = vadd.f32 %v1008, -13.280682
        %v1025 = vadd.f32 %v1009, -13.280682
        %v1026 = vadd.f32 %v1010, -13.280682
        %v1027 = vmul.f32 %v1011, %v707
        %v1028 = vmul.f32 %v1012, %v708
        %v1029 = vmul.f32 %v1013, %v709
        %v1030 = vmul.f32 %v1014, %v710
        %v1031 = vmul.f32 %v1015, %v711
        %v1032 = vmul.f32 %v1016, %v712
        %v1033 = vmul.f32 %v1017, %v713
        %v1034 = vmul.f32 %v1018, %v714
        %v1035 = vmul.f32 %v1019, %v715
        %v1036 = vmul.f32 %v1020, %v716
        %v1037 = vmul.f32 %v1021, %v717
        %v1038 = vmul.f32 %v1022, %v718
        %v1039 = vmul.f32 %v1023, %v719
        %v1040 = vmul.f32 %v1024, %v720
        %v1041 = vmul.f32 %v1025, %v721
        %v1042 = vmul.f32 %v1026, %v722
        %v1043 = vadd.f32 %v1027, 1.0
        %v1044 = vadd.f32 %v1028, 1.0
        %v1045 = vadd.f32 %v1029, 1.0
        %v1046 = vadd.f32 %v1030, 1.0
        %v1047 = vadd.f32 %v1031, 1.0
        %v1048 = vadd.f32 %v1032, 1.0
        %v1049 = vadd.f32 %v1033, 1.0
        %v1050 = vadd.f32 %v1034, 1.0
        %v1051 = vadd.f32 %v1035, 1.0
        %v1052 = vadd.f32 %v1036, 1.0
        %v1053 = vadd.f32 %v1037, 1.0
        %v1054 = vadd.f32 %v1038, 1.0
        %v1055 = vadd.f32 %v1039, 1.0
        %v1056 = vadd.f32 %v1040, 1.0
        %v1057 = vadd.f32 %v1041, 1.0
        %v1058 = vadd.f32 %v1042, 1.0
        %v1059 = vrcp.pop %v1043
        %v1060 = vmul.f32 %v883, %v1059
        %v1061 = vrcp.pop %v1044
        %v1062 = vmul.f32 %v884, %v1061
        %v1063 = vrcp.pop %v1045
        %v1064 = vmul.f32 %v885, %v1063
        %v1065 = vrcp.pop %v1046
        %v1066 = vmul.f32 %v886, %v1065
        %v1067 = vrcp.pop %v1047
        %v1068 = vmul.f32 %v887, %v1067
        %v1069 = vrcp.pop %v1048
        %v1070 = vmul.f32 %v888, %v1069
        %v1071 = vrcp.pop %v1049
        %v1072 = vmul.f32 %v889, %v1071
        %v1073 = vrcp.pop %v1050
        %v1074 = vmul.f32 %v890, %v1073
        %v1075 = vrcp.pop %v1051
        %v1076 = vmul.f32 %v891, %v1075
        %v1077 = vrcp.pop %v1052
        %v1078 = vmul.f32 %v892, %v1077
        %v1079 = vrcp.pop %v1053
        %v1080 = vmul.f32 %v893, %v1079
        %v1081 = vrcp.pop %v1054
        %v1082 = vmul.f32 %v894, %v1081
        %v1083 = vrcp.pop %v1055
        %v1084 = vmul.f32 %v895, %v1083
        %v1085 = vrcp.pop %v1056
        %v1086 = vmul.f32 %v896, %v1085
        %v1087 = vrcp.pop %v1057
        %v1088 = vmul.f32 %v897, %v1087
        %v1089 = vrcp.pop %v1058
        %v1090 = vmul.f32 %v898, %v1089
        %v1091 = vsub.f32 1.0, %v675
        %v1092 = vsub.f32 1.0, %v676
        %v1093 = vsub.f32 1.0, %v677
        %v1094 = vsub.f32 1.0, %v678
        %v1095 = vsub.f32 1.0, %v679
        %v1096 = vsub.f32 1.0, %v680
        %v1097 = vsub.f32 1.0, %v681
        %v1098 = vsub.f32 1.0, %v682
        %v1099 = vsub.f32 1.0, %v683
        %v1100 = vsub.f32 1.0, %v684
        %v1101 = vsub.f32 1.0, %v685
        %v1102 = vsub.f32 1.0, %v686
        %v1103 = vsub.f32 1.0, %v687
        %v1104 = vsub.f32 1.0, %v688
        %v1105 = vsub.f32 1.0, %v689
        %v1106 = vsub.f32 1.0, %v690
        %v1107 = vmin.f32 %v675, %v1091
        %v1108 = vmin.f32 %v676, %v1092
        %v1109 = vmin.f32 %v677, %v1093
        %v1110 = vmin.f32 %v678, %v1094
        %v1111 = vmin.f32 %v679, %v1095
        %v1112 = vmin.f32 %v680, %v1096
        %v1113 = vmin.f32 %v681, %v1097
        %v1114 = vmin.f32 %v682, %v1098
        %v1115 = vmin.f32 %v683, %v1099
        %v1116 = vmin.f32 %v684, %v1100
        %v1117 = vmin.f32 %v685, %v1101
        %v1118 = vmin.f32 %v686, %v1102
        %v1119 = vmin.f32 %v687, %v1103
        %v1120 = vmin.f32 %v688, %v1104
        %v1121 = vmin.f32 %v689, %v1105
        %v1122 = vmin.f32 %v690, %v1106
        %v1123 = vlog2.pop %v1107
        %v1124 = vmul.f32 %v1123, 0.6931472
        %v1125 = vlog2.pop %v1108
        %v1126 = vmul.f32 %v1125, 0.6931472
        %v1127 = vlog2.pop %v1109
        %v1128 = vmul.f32 %v1127, 0.6931472
        %v1129 = vlog2.pop %v1110
        %v1130 = vmul.f32 %v1129, 0.6931472
        %v1131 = vlog2.pop %v1111
        %v1132 = vmul.f32 %v1131, 0.6931472
        %v1133 = vlog2.pop %v1112
        %v1134 = vmul.f32 %v1133, 0.6931472
        %v1135 = vlog2.pop %v1113
        %v1136 = vmul.f32 %v1135, 0.6931472
        %v1137 = vlog2.pop %v1114
        %v1138 = vmul.f32 %v1137, 0.6931472
        %v1139 = vlog2.pop %v1115
        %v1140 = vmul.f32 %v1139, 0.6931472
        %v1141 = vlog2.pop %v1116
        %v1142 = vmul.f32 %v1141, 0.6931472
        %v1143 = vlog2.pop %v1117
        %v1144 = vmul.f32 %v1143, 0.6931472
        %v1145 = vlog2.pop %v1118
        %v1146 = vmul.f32 %v1145, 0.6931472
        %v1147 = vlog2.pop %v1119
        %v1148 = vmul.f32 %v1147, 0.6931472
        %v1149 = vlog2.pop %v1120
        %v1150 = vmul.f32 %v1149, 0.6931472
        %v1151 = vlog2.pop %v1121
        %v1152 = vmul.f32 %v1151, 0.6931472
        %v1153 = vlog2.pop %v1122
        %v1154 = vmul.f32 %v1153, 0.6931472
        %v1155 = vmul.f32 %v1124, -2.0
        %v1156 = vmul.f32 %v1126, -2.0
        %v1157 = vmul.f32 %v1128, -2.0
        %v1158 = vmul.f32 %v1130, -2.0
        %v1159 = vmul.f32 %v1132, -2.0
        %v1160 = vmul.f32 %v1134, -2.0
        %v1161 = vmul.f32 %v1136, -2.0
        %v1162 = vmul.f32 %v1138, -2.0
        %v1163 = vmul.f32 %v1140, -2.0
        %v1164 = vmul.f32 %v1142, -2.0
        %v1165 = vmul.f32 %v1144, -2.0
        %v1166 = vmul.f32 %v1146, -2.0
        %v1167 = vmul.f32 %v1148, -2.0
        %v1168 = vmul.f32 %v1150, -2.0
        %v1169 = vmul.f32 %v1152, -2.0
        %v1170 = vmul.f32 %v1154, -2.0
        %v1171 = vrsqrt.pop %v1155
        %v1172 = vmul.f32 %v1155, %v1171
        %vm1173 = vcmp.eq.f32.partialorder %v1155, inf
        %v1174 = vsel %vm1173, %v1155, %v1172
        %vm1175 = vcmp.eq.f32.partialorder %v1155, 0.0
        %v1176 = vand.u32 %v1155, 2147483648
        %v1177 = vsel %vm1175, %v1176, %v1174
        %v1178 = vrsqrt.pop %v1156
        %v1179 = vmul.f32 %v1156, %v1178
        %vm1180 = vcmp.eq.f32.partialorder %v1156, inf
        %v1181 = vsel %vm1180, %v1156, %v1179
        %vm1182 = vcmp.eq.f32.partialorder %v1156, 0.0
        %v1183 = vand.u32 %v1156, 2147483648
        %v1184 = vsel %vm1182, %v1183, %v1181
        %v1185 = vrsqrt.pop %v1157
        %v1186 = vmul.f32 %v1157, %v1185
        %vm1187 = vcmp.eq.f32.partialorder %v1157, inf
        %v1188 = vsel %vm1187, %v1157, %v1186
        %vm1189 = vcmp.eq.f32.partialorder %v1157, 0.0
        %v1190 = vand.u32 %v1157, 2147483648
        %v1191 = vsel %vm1189, %v1190, %v1188
        %v1192 = vrsqrt.pop %v1158
        %v1193 = vmul.f32 %v1158, %v1192
        %vm1194 = vcmp.eq.f32.partialorder %v1158, inf
        %v1195 = vsel %vm1194, %v1158, %v1193
        %vm1196 = vcmp.eq.f32.partialorder %v1158, 0.0
        %v1197 = vand.u32 %v1158, 2147483648
        %v1198 = vsel %vm1196, %v1197, %v1195
        %v1199 = vrsqrt.pop %v1159
        %v1200 = vmul.f32 %v1159, %v1199
        %vm1201 = vcmp.eq.f32.partialorder %v1159, inf
        %v1202 = vsel %vm1201, %v1159, %v1200
        %vm1203 = vcmp.eq.f32.partialorder %v1159, 0.0
        %v1204 = vand.u32 %v1159, 2147483648
        %v1205 = vsel %vm1203, %v1204, %v1202
        %v1206 = vrsqrt.pop %v1160
        %v1207 = vmul.f32 %v1160, %v1206
        %vm1208 = vcmp.eq.f32.partialorder %v1160, inf
        %v1209 = vsel %vm1208, %v1160, %v1207
        %vm1210 = vcmp.eq.f32.partialorder %v1160, 0.0
        %v1211 = vand.u32 %v1160, 2147483648
        %v1212 = vsel %vm1210, %v1211, %v1209
        %v1213 = vrsqrt.pop %v1161
        %v1214 = vmul.f32 %v1161, %v1213
        %vm1215 = vcmp.eq.f32.partialorder %v1161, inf
        %v1216 = vsel %vm1215, %v1161, %v1214
        %vm1217 = vcmp.eq.f32.partialorder %v1161, 0.0
        %v1218 = vand.u32 %v1161, 2147483648
        %v1219 = vsel %vm1217, %v1218, %v1216
        %v1220 = vrsqrt.pop %v1162
        %v1221 = vmul.f32 %v1162, %v1220
        %vm1222 = vcmp.eq.f32.partialorder %v1162, inf
        %v1223 = vsel %vm1222, %v1162, %v1221
        %vm1224 = vcmp.eq.f32.partialorder %v1162, 0.0
        %v1225 = vand.u32 %v1162, 2147483648
        %v1226 = vsel %vm1224, %v1225, %v1223
        %v1227 = vrsqrt.pop %v1163
        %v1228 = vmul.f32 %v1163, %v1227
        %vm1229 = vcmp.eq.f32.partialorder %v1163, inf
        %v1230 = vsel %vm1229, %v1163, %v1228
        %vm1231 = vcmp.eq.f32.partialorder %v1163, 0.0
        %v1232 = vand.u32 %v1163, 2147483648
        %v1233 = vsel %vm1231, %v1232, %v1230
        %v1234 = vrsqrt.pop %v1164
        %v1235 = vmul.f32 %v1164, %v1234
        %vm1236 = vcmp.eq.f32.partialorder %v1164, inf
        %v1237 = vsel %vm1236, %v1164, %v1235
        %vm1238 = vcmp.eq.f32.partialorder %v1164, 0.0
        %v1239 = vand.u32 %v1164, 2147483648
        %v1240 = vsel %vm1238, %v1239, %v1237
        %v1241 = vrsqrt.pop %v1165
        %v1242 = vmul.f32 %v1165, %v1241
        %vm1243 = vcmp.eq.f32.partialorder %v1165, inf
        %v1244 = vsel %vm1243, %v1165, %v1242
        %vm1245 = vcmp.eq.f32.partialorder %v1165, 0.0
        %v1246 = vand.u32 %v1165, 2147483648
        %v1247 = vsel %vm1245, %v1246, %v1244
        %v1248 = vrsqrt.pop %v1166
        %v1249 = vmul.f32 %v1166, %v1248
        %vm1250 = vcmp.eq.f32.partialorder %v1166, inf
        %v1251 = vsel %vm1250, %v1166, %v1249
        %vm1252 = vcmp.eq.f32.partialorder %v1166, 0.0
        %v1253 = vand.u32 %v1166, 2147483648
        %v1254 = vsel %vm1252, %v1253, %v1251
        %v1255 = vrsqrt.pop %v1167
        %v1256 = vmul.f32 %v1167, %v1255
        %vm1257 = vcmp.eq.f32.partialorder %v1167, inf
        %v1258 = vsel %vm1257, %v1167, %v1256
        %vm1259 = vcmp.eq.f32.partialorder %v1167, 0.0
        %v1260 = vand.u32 %v1167, 2147483648
        %v1261 = vsel %vm1259, %v1260, %v1258
        %v1262 = vrsqrt.pop %v1168
        %v1263 = vmul.f32 %v1168, %v1262
        %vm1264 = vcmp.eq.f32.partialorder %v1168, inf
        %v1265 = vsel %vm1264, %v1168, %v1263
        %vm1266 = vcmp.eq.f32.partialorder %v1168, 0.0
        %v1267 = vand.u32 %v1168, 2147483648
        %v1268 = vsel %vm1266, %v1267, %v1265
        %v1269 = vrsqrt.pop %v1169
        %v1270 = vmul.f32 %v1169, %v1269
        %vm1271 = vcmp.eq.f32.partialorder %v1169, inf
        %v1272 = vsel %vm1271, %v1169, %v1270
        %vm1273 = vcmp.eq.f32.partialorder %v1169, 0.0
        %v1274 = vand.u32 %v1169, 2147483648
        %v1275 = vsel %vm1273, %v1274, %v1272
        %v1276 = vrsqrt.pop %v1170
        %v1277 = vmul.f32 %v1170, %v1276
        %vm1278 = vcmp.eq.f32.partialorder %v1170, inf
        %v1279 = vsel %vm1278, %v1170, %v1277
        %vm1280 = vcmp.eq.f32.partialorder %v1170, 0.0
        %v1281 = vand.u32 %v1170, 2147483648
        %v1282 = vsel %vm1280, %v1281, %v1279
        %v1283 = vmul.f32 %v1177, -0.007784894
        %v1284 = vmul.f32 %v1184, -0.007784894
        %v1285 = vmul.f32 %v1191, -0.007784894
        %v1286 = vmul.f32 %v1198, -0.007784894
        %v1287 = vmul.f32 %v1205, -0.007784894
        %v1288 = vmul.f32 %v1212, -0.007784894
        %v1289 = vmul.f32 %v1219, -0.007784894
        %v1290 = vmul.f32 %v1226, -0.007784894
        %v1291 = vmul.f32 %v1233, -0.007784894
        %v1292 = vmul.f32 %v1240, -0.007784894
        %v1293 = vmul.f32 %v1247, -0.007784894
        %v1294 = vmul.f32 %v1254, -0.007784894
        %v1295 = vmul.f32 %v1261, -0.007784894
        %v1296 = vmul.f32 %v1268, -0.007784894
        %v1297 = vmul.f32 %v1275, -0.007784894
        %v1298 = vmul.f32 %v1282, -0.007784894
        %v1299 = vadd.f32 %v1283, -0.32239646
        %v1300 = vadd.f32 %v1284, -0.32239646
        %v1301 = vadd.f32 %v1285, -0.32239646
        %v1302 = vadd.f32 %v1286, -0.32239646
        %v1303 = vadd.f32 %v1287, -0.32239646
        %v1304 = vadd.f32 %v1288, -0.32239646
        %v1305 = vadd.f32 %v1289, -0.32239646
        %v1306 = vadd.f32 %v1290, -0.32239646
        %v1307 = vadd.f32 %v1291, -0.32239646
        %v1308 = vadd.f32 %v1292, -0.32239646
        %v1309 = vadd.f32 %v1293, -0.32239646
        %v1310 = vadd.f32 %v1294, -0.32239646
        %v1311 = vadd.f32 %v1295, -0.32239646
        %v1312 = vadd.f32 %v1296, -0.32239646
        %v1313 = vadd.f32 %v1297, -0.32239646
        %v1314 = vadd.f32 %v1298, -0.32239646
        %v1315 = vmul.f32 %v1299, %v1177
        %v1316 = vmul.f32 %v1300, %v1184
        %v1317 = vmul.f32 %v1301, %v1191
        %v1318 = vmul.f32 %v1302, %v1198
        %v1319 = vmul.f32 %v1303, %v1205
        %v1320 = vmul.f32 %v1304, %v1212
        %v1321 = vmul.f32 %v1305, %v1219
        %v1322 = vmul.f32 %v1306, %v1226
        %v1323 = vmul.f32 %v1307, %v1233
        %v1324 = vmul.f32 %v1308, %v1240
        %v1325 = vmul.f32 %v1309, %v1247
        %v1326 = vmul.f32 %v1310, %v1254
        %v1327 = vmul.f32 %v1311, %v1261
        %v1328 = vmul.f32 %v1312, %v1268
        %v1329 = vmul.f32 %v1313, %v1275
        %v1330 = vmul.f32 %v1314, %v1282
        %v1331 = vadd.f32 %v1315, -2.4007583
        %v1332 = vadd.f32 %v1316, -2.4007583
        %v1333 = vadd.f32 %v1317, -2.4007583
        %v1334 = vadd.f32 %v1318, -2.4007583
        %v1335 = vadd.f32 %v1319, -2.4007583
        %v1336 = vadd.f32 %v1320, -2.4007583
        %v1337 = vadd.f32 %v1321, -2.4007583
        %v1338 = vadd.f32 %v1322, -2.4007583
        %v1339 = vadd.f32 %v1323, -2.4007583
        %v1340 = vadd.f32 %v1324, -2.4007583
        %v1341 = vadd.f32 %v1325, -2.4007583
        %v1342 = vadd.f32 %v1326, -2.4007583
        %v1343 = vadd.f32 %v1327, -2.4007583
        %v1344 = vadd.f32 %v1328, -2.4007583
        %v1345 = vadd.f32 %v1329, -2.4007583
        %v1346 = vadd.f32 %v1330, -2.4007583
        %v1347 = vmul.f32 %v1331, %v1177
        %v1348 = vmul.f32 %v1332, %v1184
        %v1349 = vmul.f32 %v1333, %v1191
        %v1350 = vmul.f32 %v1334, %v1198
        %v1351 = vmul.f32 %v1335, %v1205
        %v1352 = vmul.f32 %v1336, %v1212
        %v1353 = vmul.f32 %v1337, %v1219
        %v1354 = vmul.f32 %v1338, %v1226
        %v1355 = vmul.f32 %v1339, %v1233
        %v1356 = vmul.f32 %v1340, %v1240
        %v1357 = vmul.f32 %v1341, %v1247
        %v1358 = vmul.f32 %v1342, %v1254
        %v1359 = vmul.f32 %v1343, %v1261
        %v1360 = vmul.f32 %v1344, %v1268
        %v1361 = vmul.f32 %v1345, %v1275
        %v1362 = vmul.f32 %v1346, %v1282
        %v1363 = vadd.f32 %v1347, -2.5497324
        %v1364 = vadd.f32 %v1348, -2.5497324
        %v1365 = vadd.f32 %v1349, -2.5497324
        %v1366 = vadd.f32 %v1350, -2.5497324
        %v1367 = vadd.f32 %v1351, -2.5497324
        %v1368 = vadd.f32 %v1352, -2.5497324
        %v1369 = vadd.f32 %v1353, -2.5497324
        %v1370 = vadd.f32 %v1354, -2.5497324
        %v1371 = vadd.f32 %v1355, -2.5497324
        %v1372 = vadd.f32 %v1356, -2.5497324
        %v1373 = vadd.f32 %v1357, -2.5497324
        %v1374 = vadd.f32 %v1358, -2.5497324
        %v1375 = vadd.f32 %v1359, -2.5497324
        %v1376 = vadd.f32 %v1360, -2.5497324
        %v1377 = vadd.f32 %v1361, -2.5497324
        %v1378 = vadd.f32 %v1362, -2.5497324
        %v1379 = vmul.f32 %v1363, %v1177
        %v1380 = vmul.f32 %v1364, %v1184
        %v1381 = vmul.f32 %v1365, %v1191
        %v1382 = vmul.f32 %v1366, %v1198
        %v1383 = vmul.f32 %v1367, %v1205
        %v1384 = vmul.f32 %v1368, %v1212
        %v1385 = vmul.f32 %v1369, %v1219
        %v1386 = vmul.f32 %v1370, %v1226
        %v1387 = vmul.f32 %v1371, %v1233
        %v1388 = vmul.f32 %v1372, %v1240
        %v1389 = vmul.f32 %v1373, %v1247
        %v1390 = vmul.f32 %v1374, %v1254
        %v1391 = vmul.f32 %v1375, %v1261
        %v1392 = vmul.f32 %v1376, %v1268
        %v1393 = vmul.f32 %v1377, %v1275
        %v1394 = vmul.f32 %v1378, %v1282
        %v1395 = vadd.f32 %v1379, 4.3746643
        %v1396 = vadd.f32 %v1380, 4.3746643
        %v1397 = vadd.f32 %v1381, 4.3746643
        %v1398 = vadd.f32 %v1382, 4.3746643
        %v1399 = vadd.f32 %v1383, 4.3746643
        %v1400 = vadd.f32 %v1384, 4.3746643
        %v1401 = vadd.f32 %v1385, 4.3746643
        %v1402 = vadd.f32 %v1386, 4.3746643
        %v1403 = vadd.f32 %v1387, 4.3746643
        %v1404 = vadd.f32 %v1388, 4.3746643
        %v1405 = vadd.f32 %v1389, 4.3746643
        %v1406 = vadd.f32 %v1390, 4.3746643
        %v1407 = vadd.f32 %v1391, 4.3746643
        %v1408 = vadd.f32 %v1392, 4.3746643
        %v1409 = vadd.f32 %v1393, 4.3746643
        %v1410 = vadd.f32 %v1394, 4.3746643
        %v1411 = vmul.f32 %v1395, %v1177
        %v1412 = vmul.f32 %v1396, %v1184
        %v1413 = vmul.f32 %v1397, %v1191
        %v1414 = vmul.f32 %v1398, %v1198
        %v1415 = vmul.f32 %v1399, %v1205
        %v1416 = vmul.f32 %v1400, %v1212
        %v1417 = vmul.f32 %v1401, %v1219
        %v1418 = vmul.f32 %v1402, %v1226
        %v1419 = vmul.f32 %v1403, %v1233
        %v1420 = vmul.f32 %v1404, %v1240
        %v1421 = vmul.f32 %v1405, %v1247
        %v1422 = vmul.f32 %v1406, %v1254
        %v1423 = vmul.f32 %v1407, %v1261
        %v1424 = vmul.f32 %v1408, %v1268
        %v1425 = vmul.f32 %v1409, %v1275
        %v1426 = vmul.f32 %v1410, %v1282
        %v1427 = vadd.f32 %v1411, 2.938164
        %v1428 = vadd.f32 %v1412, 2.938164
        %v1429 = vadd.f32 %v1413, 2.938164
        %v1430 = vadd.f32 %v1414, 2.938164
        %v1431 = vadd.f32 %v1415, 2.938164
        %v1432 = vadd.f32 %v1416, 2.938164
        %v1433 = vadd.f32 %v1417, 2.938164
        %v1434 = vadd.f32 %v1418, 2.938164
        %v1435 = vadd.f32 %v1419, 2.938164
        %v1436 = vadd.f32 %v1420, 2.938164
        %v1437 = vadd.f32 %v1421, 2.938164
        %v1438 = vadd.f32 %v1422, 2.938164
        %v1439 = vadd.f32 %v1423, 2.938164
        %v1440 = vadd.f32 %v1424, 2.938164
        %v1441 = vadd.f32 %v1425, 2.938164
        %v1442 = vadd.f32 %v1426, 2.938164
        %v1443 = vmul.f32 %v1177, 0.007784696
        %v1444 = vmul.f32 %v1184, 0.007784696
        %v1445 = vmul.f32 %v1191, 0.007784696
        %v1446 = vmul.f32 %v1198, 0.007784696
        %v1447 = vmul.f32 %v1205, 0.007784696
        %v1448 = vmul.f32 %v1212, 0.007784696
        %v1449 = vmul.f32 %v1219, 0.007784696
        %v1450 = vmul.f32 %v1226, 0.007784696
        %v1451 = vmul.f32 %v1233, 0.007784696
        %v1452 = vmul.f32 %v1240, 0.007784696
        %v1453 = vmul.f32 %v1247, 0.007784696
        %v1454 = vmul.f32 %v1254, 0.007784696
        %v1455 = vmul.f32 %v1261, 0.007784696
        %v1456 = vmul.f32 %v1268, 0.007784696
        %v1457 = vmul.f32 %v1275, 0.007784696
        %v1458 = vmul.f32 %v1282, 0.007784696
        %v1459 = vadd.f32 %v1443, 0.32246712
        %v1460 = vadd.f32 %v1444, 0.32246712
        %v1461 = vadd.f32 %v1445, 0.32246712
        %v1462 = vadd.f32 %v1446, 0.32246712
        %v1463 = vadd.f32 %v1447, 0.32246712
        %v1464 = vadd.f32 %v1448, 0.32246712
        %v1465 = vadd.f32 %v1449, 0.32246712
        %v1466 = vadd.f32 %v1450, 0.32246712
        %v1467 = vadd.f32 %v1451, 0.32246712
        %v1468 = vadd.f32 %v1452, 0.32246712
        %v1469 = vadd.f32 %v1453, 0.32246712
        %v1470 = vadd.f32 %v1454, 0.32246712
        %v1471 = vadd.f32 %v1455, 0.32246712
        %v1472 = vadd.f32 %v1456, 0.32246712
        %v1473 = vadd.f32 %v1457, 0.32246712
        %v1474 = vadd.f32 %v1458, 0.32246712
        %v1475 = vmul.f32 %v1459, %v1177
        %v1476 = vmul.f32 %v1460, %v1184
        %v1477 = vmul.f32 %v1461, %v1191
        %v1478 = vmul.f32 %v1462, %v1198
        %v1479 = vmul.f32 %v1463, %v1205
        %v1480 = vmul.f32 %v1464, %v1212
        %v1481 = vmul.f32 %v1465, %v1219
        %v1482 = vmul.f32 %v1466, %v1226
        %v1483 = vmul.f32 %v1467, %v1233
        %v1484 = vmul.f32 %v1468, %v1240
        %v1485 = vmul.f32 %v1469, %v1247
        %v1486 = vmul.f32 %v1470, %v1254
        %v1487 = vmul.f32 %v1471, %v1261
        %v1488 = vmul.f32 %v1472, %v1268
        %v1489 = vmul.f32 %v1473, %v1275
        %v1490 = vmul.f32 %v1474, %v1282
        %v1491 = vadd.f32 %v1475, 2.4451342
        %v1492 = vadd.f32 %v1476, 2.4451342
        %v1493 = vadd.f32 %v1477, 2.4451342
        %v1494 = vadd.f32 %v1478, 2.4451342
        %v1495 = vadd.f32 %v1479, 2.4451342
        %v1496 = vadd.f32 %v1480, 2.4451342
        %v1497 = vadd.f32 %v1481, 2.4451342
        %v1498 = vadd.f32 %v1482, 2.4451342
        %v1499 = vadd.f32 %v1483, 2.4451342
        %v1500 = vadd.f32 %v1484, 2.4451342
        %v1501 = vadd.f32 %v1485, 2.4451342
        %v1502 = vadd.f32 %v1486, 2.4451342
        %v1503 = vadd.f32 %v1487, 2.4451342
        %v1504 = vadd.f32 %v1488, 2.4451342
        %v1505 = vadd.f32 %v1489, 2.4451342
        %v1506 = vadd.f32 %v1490, 2.4451342
        %v1507 = vmul.f32 %v1491, %v1177
        %v1508 = vmul.f32 %v1492, %v1184
        %v1509 = vmul.f32 %v1493, %v1191
        %v1510 = vmul.f32 %v1494, %v1198
        %v1511 = vmul.f32 %v1495, %v1205
        %v1512 = vmul.f32 %v1496, %v1212
        %v1513 = vmul.f32 %v1497, %v1219
        %v1514 = vmul.f32 %v1498, %v1226
        %v1515 = vmul.f32 %v1499, %v1233
        %v1516 = vmul.f32 %v1500, %v1240
        %v1517 = vmul.f32 %v1501, %v1247
        %v1518 = vmul.f32 %v1502, %v1254
        %v1519 = vmul.f32 %v1503, %v1261
        %v1520 = vmul.f32 %v1504, %v1268
        %v1521 = vmul.f32 %v1505, %v1275
        %v1522 = vmul.f32 %v1506, %v1282
        %v1523 = vadd.f32 %v1507, 3.7544086
        %v1524 = vadd.f32 %v1508, 3.7544086
        %v1525 = vadd.f32 %v1509, 3.7544086
        %v1526 = vadd.f32 %v1510, 3.7544086
        %v1527 = vadd.f32 %v1511, 3.7544086
        %v1528 = vadd.f32 %v1512, 3.7544086
        %v1529 = vadd.f32 %v1513, 3.7544086
        %v1530 = vadd.f32 %v1514, 3.7544086
        %v1531 = vadd.f32 %v1515, 3.7544086
        %v1532 = vadd.f32 %v1516, 3.7544086
        %v1533 = vadd.f32 %v1517, 3.7544086
        %v1534 = vadd.f32 %v1518, 3.7544086
        %v1535 = vadd.f32 %v1519, 3.7544086
        %v1536 = vadd.f32 %v1520, 3.7544086
        %v1537 = vadd.f32 %v1521, 3.7544086
        %v1538 = vadd.f32 %v1522, 3.7544086
        %v1539 = vmul.f32 %v1523, %v1177
        %v1540 = vmul.f32 %v1524, %v1184
        %v1541 = vmul.f32 %v1525, %v1191
        %v1542 = vmul.f32 %v1526, %v1198
        %v1543 = vmul.f32 %v1527, %v1205
        %v1544 = vmul.f32 %v1528, %v1212
        %v1545 = vmul.f32 %v1529, %v1219
        %v1546 = vmul.f32 %v1530, %v1226
        %v1547 = vmul.f32 %v1531, %v1233
        %v1548 = vmul.f32 %v1532, %v1240
        %v1549 = vmul.f32 %v1533, %v1247
        %v1550 = vmul.f32 %v1534, %v1254
        %v1551 = vmul.f32 %v1535, %v1261
        %v1552 = vmul.f32 %v1536, %v1268
        %v1553 = vmul.f32 %v1537, %v1275
        %v1554 = vmul.f32 %v1538, %v1282
        %v1555 = vadd.f32 %v1539, 1.0
        %v1556 = vadd.f32 %v1540, 1.0
        %v1557 = vadd.f32 %v1541, 1.0
        %v1558 = vadd.f32 %v1542, 1.0
        %v1559 = vadd.f32 %v1543, 1.0
        %v1560 = vadd.f32 %v1544, 1.0
        %v1561 = vadd.f32 %v1545, 1.0
        %v1562 = vadd.f32 %v1546, 1.0
        %v1563 = vadd.f32 %v1547, 1.0
        %v1564 = vadd.f32 %v1548, 1.0
        %v1565 = vadd.f32 %v1549, 1.0
        %v1566 = vadd.f32 %v1550, 1.0
        %v1567 = vadd.f32 %v1551, 1.0
        %v1568 = vadd.f32 %v1552, 1.0
        %v1569 = vadd.f32 %v1553, 1.0
        %v1570 = vadd.f32 %v1554, 1.0
        %v1571 = vrcp.pop %v1555
        %v1572 = vmul.f32 %v1427, %v1571
        %v1573 = vrcp.pop %v1556
        %v1574 = vmul.f32 %v1428, %v1573
        %v1575 = vrcp.pop %v1557
        %v1576 = vmul.f32 %v1429, %v1575
        %v1577 = vrcp.pop %v1558
        %v1578 = vmul.f32 %v1430, %v1577
        %v1579 = vrcp.pop %v1559
        %v1580 = vmul.f32 %v1431, %v1579
        %v1581 = vrcp.pop %v1560
        %v1582 = vmul.f32 %v1432, %v1581
        %v1583 = vrcp.pop %v1561
        %v1584 = vmul.f32 %v1433, %v1583
        %v1585 = vrcp.pop %v1562
        %v1586 = vmul.f32 %v1434, %v1585
        %v1587 = vrcp.pop %v1563
        %v1588 = vmul.f32 %v1435, %v1587
        %v1589 = vrcp.pop %v1564
        %v1590 = vmul.f32 %v1436, %v1589
        %v1591 = vrcp.pop %v1565
        %v1592 = vmul.f32 %v1437, %v1591
        %v1593 = vrcp.pop %v1566
        %v1594 = vmul.f32 %v1438, %v1593
        %v1595 = vrcp.pop %v1567
        %v1596 = vmul.f32 %v1439, %v1595
        %v1597 = vrcp.pop %v1568
        %v1598 = vmul.f32 %v1440, %v1597
        %v1599 = vrcp.pop %v1569
        %v1600 = vmul.f32 %v1441, %v1599
        %v1601 = vrcp.pop %v1570
        %v1602 = vmul.f32 %v1442, %v1601
        %vm1603 = vcmp.gt.f32.partialorder %v675, 0.5
        %vm1604 = vcmp.gt.f32.partialorder %v676, 0.5
        %vm1605 = vcmp.gt.f32.partialorder %v677, 0.5
        %vm1606 = vcmp.gt.f32.partialorder %v678, 0.5
        %vm1607 = vcmp.gt.f32.partialorder %v679, 0.5
        %vm1608 = vcmp.gt.f32.partialorder %v680, 0.5
        %vm1609 = vcmp.gt.f32.partialorder %v681, 0.5
        %vm1610 = vcmp.gt.f32.partialorder %v682, 0.5
        %vm1611 = vcmp.gt.f32.partialorder %v683, 0.5
        %vm1612 = vcmp.gt.f32.partialorder %v684, 0.5
        %vm1613 = vcmp.gt.f32.partialorder %v685, 0.5
        %vm1614 = vcmp.gt.f32.partialorder %v686, 0.5
        %vm1615 = vcmp.gt.f32.partialorder %v687, 0.5
        %vm1616 = vcmp.gt.f32.partialorder %v688, 0.5
        %vm1617 = vcmp.gt.f32.partialorder %v689, 0.5
        %vm1618 = vcmp.gt.f32.partialorder %v690, 0.5
        %v1619 = vsub.f32 0.0, %v1572
        %v1620 = vsub.f32 0.0, %v1574
        %v1621 = vsub.f32 0.0, %v1576
        %v1622 = vsub.f32 0.0, %v1578
        %v1623 = vsub.f32 0.0, %v1580
        %v1624 = vsub.f32 0.0, %v1582
        %v1625 = vsub.f32 0.0, %v1584
        %v1626 = vsub.f32 0.0, %v1586
        %v1627 = vsub.f32 0.0, %v1588
        %v1628 = vsub.f32 0.0, %v1590
        %v1629 = vsub.f32 0.0, %v1592
        %v1630 = vsub.f32 0.0, %v1594
        %v1631 = vsub.f32 0.0, %v1596
        %v1632 = vsub.f32 0.0, %v1598
        %v1633 = vsub.f32 0.0, %v1600
        %v1634 = vsub.f32 0.0, %v1602
        %v1635 = vsel %vm1603, %v1619, %v1572
        %v1636 = vsel %vm1604, %v1620, %v1574
        %v1637 = vsel %vm1605, %v1621, %v1576
        %v1638 = vsel %vm1606, %v1622, %v1578
        %v1639 = vsel %vm1607, %v1623, %v1580
        %v1640 = vsel %vm1608, %v1624, %v1582
        %v1641 = vsel %vm1609, %v1625, %v1584
        %v1642 = vsel %vm1610, %v1626, %v1586
        %v1643 = vsel %vm1611, %v1627, %v1588
        %v1644 = vsel %vm1612, %v1628, %v1590
        %v1645 = vsel %vm1613, %v1629, %v1592
        %v1646 = vsel %vm1614, %v1630, %v1594
        %v1647 = vsel %vm1615, %v1631, %v1596
        %v1648 = vsel %vm1616, %v1632, %v1598
        %v1649 = vsel %vm1617, %v1633, %v1600
        %v1650 = vsel %vm1618, %v1634, %v1602
        %vm1651 = vcmp.lt.f32.partialorder %v1107, 0.02425
        %vm1652 = vcmp.lt.f32.partialorder %v1108, 0.02425
        %vm1653 = vcmp.lt.f32.partialorder %v1109, 0.02425
        %vm1654 = vcmp.lt.f32.partialorder %v1110, 0.02425
        %vm1655 = vcmp.lt.f32.partialorder %v1111, 0.02425
        %vm1656 = vcmp.lt.f32.partialorder %v1112, 0.02425
        %vm1657 = vcmp.lt.f32.partialorder %v1113, 0.02425
        %vm1658 = vcmp.lt.f32.partialorder %v1114, 0.02425
        %vm1659 = vcmp.lt.f32.partialorder %v1115, 0.02425
        %vm1660 = vcmp.lt.f32.partialorder %v1116, 0.02425
        %vm1661 = vcmp.lt.f32.partialorder %v1117, 0.02425
        %vm1662 = vcmp.lt.f32.partialorder %v1118, 0.02425
        %vm1663 = vcmp.lt.f32.partialorder %v1119, 0.02425
        %vm1664 = vcmp.lt.f32.partialorder %v1120, 0.02425
        %vm1665 = vcmp.lt.f32.partialorder %v1121, 0.02425
        %vm1666 = vcmp.lt.f32.partialorder %v1122, 0.02425
        %v1667 = vsel %vm1651, %v1635, %v1060
        %v1668 = vsel %vm1652, %v1636, %v1062
        %v1669 = vsel %vm1653, %v1637, %v1064
        %v1670 = vsel %vm1654, %v1638, %v1066
        %v1671 = vsel %vm1655, %v1639, %v1068
        %v1672 = vsel %vm1656, %v1640, %v1070
        %v1673 = vsel %vm1657, %v1641, %v1072
        %v1674 = vsel %vm1658, %v1642, %v1074
        %v1675 = vsel %vm1659, %v1643, %v1076
        %v1676 = vsel %vm1660, %v1644, %v1078
        %v1677 = vsel %vm1661, %v1645, %v1080
        %v1678 = vsel %vm1662, %v1646, %v1082
        %v1679 = vsel %vm1663, %v1647, %v1084
        %v1680 = vsel %vm1664, %v1648, %v1086
        %v1681 = vsel %vm1665, %v1649, %v1088
        %v1682 = vsel %vm1666, %v1650, %v1090
        %v1683 = vstv %s382
        %v1684 = vadd.s32 %v418, %v1683
        %v1685 = vshra.s32 %v1684, 16
        %v1686 = vand.u32 %v1685, 65535
        %v1687 = vxor.u32 %v1684, %v1686
        %v1688 = vmul.u32 %v1687, 2246822507
        %v1689 = vshra.s32 %v1688, 13
        %v1690 = vand.u32 %v1689, 524287
        %v1691 = vxor.u32 %v1688, %v1690
        %v1692 = vmul.u32 %v1691, 3266489909
        %v1693 = vshra.s32 %v1692, 16
        %v1694 = vand.u32 %v1693, 65535
        %v1695 = vxor.u32 %v1692, %v1694
        %v1696 = vand.u32 %v1695, 8388607
        %v1697 = vcvt.s32.f32 %v1696
        %v1698 = vadd.f32 %v1697, 0.5
        %v1699 = vmul.f32 %v1698, 1.1920929e-07
        %v1700 = vsub.f32 %v1699, 0.5
        %v1701 = vmul.f32 %v1700, %v1700
        %v1702 = vmul.f32 %v1701, -39.69683
        %v1703 = vadd.f32 %v1702, 220.9461
        %v1704 = vmul.f32 %v1703, %v1701
        %v1705 = vadd.f32 %v1704, -275.9285
        %v1706 = vmul.f32 %v1705, %v1701
        %v1707 = vadd.f32 %v1706, 138.35776
        %v1708 = vmul.f32 %v1707, %v1701
        %v1709 = vadd.f32 %v1708, -30.664799
        %v1710 = vmul.f32 %v1709, %v1701
        %v1711 = vadd.f32 %v1710, 2.5066283
        %v1712 = vmul.f32 %v1711, %v1700
        %v1713 = vmul.f32 %v1701, -54.476097
        %v1714 = vadd.f32 %v1713, 161.58583
        %v1715 = vmul.f32 %v1714, %v1701
        %v1716 = vadd.f32 %v1715, -155.69897
        %v1717 = vmul.f32 %v1716, %v1701
        %v1718 = vadd.f32 %v1717, 66.801315
        %v1719 = vmul.f32 %v1718, %v1701
        %v1720 = vadd.f32 %v1719, -13.280682
        %v1721 = vmul.f32 %v1720, %v1701
        %v1722 = vadd.f32 %v1721, 1.0
        %v1723 = vrcp.pop %v1722
        %v1724 = vmul.f32 %v1712, %v1723
        %v1725 = vsub.f32 1.0, %v1699
        %v1726 = vmin.f32 %v1699, %v1725
        %v1727 = vlog2.pop %v1726
        %v1728 = vmul.f32 %v1727, 0.6931472
        %v1729 = vmul.f32 %v1728, -2.0
        %v1730 = vrsqrt.pop %v1729
        %v1731 = vmul.f32 %v1729, %v1730
        %vm1732 = vcmp.eq.f32.partialorder %v1729, inf
        %v1733 = vsel %vm1732, %v1729, %v1731
        %vm1734 = vcmp.eq.f32.partialorder %v1729, 0.0
        %v1735 = vand.u32 %v1729, 2147483648
        %v1736 = vsel %vm1734, %v1735, %v1733
        %v1737 = vmul.f32 %v1736, -0.007784894
        %v1738 = vadd.f32 %v1737, -0.32239646
        %v1739 = vmul.f32 %v1738, %v1736
        %v1740 = vadd.f32 %v1739, -2.4007583
        %v1741 = vmul.f32 %v1740, %v1736
        %v1742 = vadd.f32 %v1741, -2.5497324
        %v1743 = vmul.f32 %v1742, %v1736
        %v1744 = vadd.f32 %v1743, 4.3746643
        %v1745 = vmul.f32 %v1744, %v1736
        %v1746 = vadd.f32 %v1745, 2.938164
        %v1747 = vmul.f32 %v1736, 0.007784696
        %v1748 = vadd.f32 %v1747, 0.32246712
        %v1749 = vmul.f32 %v1748, %v1736
        %v1750 = vadd.f32 %v1749, 2.4451342
        %v1751 = vmul.f32 %v1750, %v1736
        %v1752 = vadd.f32 %v1751, 3.7544086
        %v1753 = vmul.f32 %v1752, %v1736
        %v1754 = vadd.f32 %v1753, 1.0
        %v1755 = vrcp.pop %v1754
        %v1756 = vmul.f32 %v1746, %v1755
        %vm1757 = vcmp.gt.f32.partialorder %v1699, 0.5
        %v1758 = vsub.f32 0.0, %v1756
        %v1759 = vsel %vm1757, %v1758, %v1756
        %vm1760 = vcmp.lt.f32.partialorder %v1726, 0.02425
        %v1761 = vsel %vm1760, %v1759, %v1724
        %v1762 = vld [vmem:[%s303] sm:$0xf]
        %v1763 = vld [vmem:[%s303 + $0x4] sm:$0xf]
        %v1764 = vld [vmem:[%s303 + $0x8] sm:$0xf]
        %v1765 = vld [vmem:[%s303 + $0xc] sm:$0xf]
        %v1766 = vld [vmem:[%s303 + $0x10] sm:$0xf]
        %v1767 = vld [vmem:[%s303 + $0x14] sm:$0xf]
        %v1768 = vld [vmem:[%s303 + $0x18] sm:$0xf]
        %v1769 = vld [vmem:[%s303 + $0x1c] sm:$0xf]
        %v1770 = vld [vmem:[%s303 + $0x20] sm:$0xf]
        %v1771 = vld [vmem:[%s303 + $0x24] sm:$0xf]
        %v1772 = vld [vmem:[%s303 + $0x28] sm:$0xf]
        %v1773 = vld [vmem:[%s303 + $0x2c] sm:$0xf]
        %v1774 = vld [vmem:[%s303 + $0x30] sm:$0xf]
        %v1775 = vld [vmem:[%s303 + $0x34] sm:$0xf]
        %v1776 = vld [vmem:[%s303 + $0x38] sm:$0xf]
        %v1777 = vld [vmem:[%s303 + $0x3c] sm:$0xf]
        %v1778 = vunpack.c.l.bf16 %v1762
        %v1779 = vunpack.c.l.bf16 %v1763
        %v1780 = vunpack.c.l.bf16 %v1764
        %v1781 = vunpack.c.l.bf16 %v1765
        %v1782 = vunpack.c.l.bf16 %v1766
        %v1783 = vunpack.c.l.bf16 %v1767
        %v1784 = vunpack.c.l.bf16 %v1768
        %v1785 = vunpack.c.l.bf16 %v1769
        %v1786 = vunpack.c.l.bf16 %v1770
        %v1787 = vunpack.c.l.bf16 %v1771
        %v1788 = vunpack.c.l.bf16 %v1772
        %v1789 = vunpack.c.l.bf16 %v1773
        %v1790 = vunpack.c.l.bf16 %v1774
        %v1791 = vunpack.c.l.bf16 %v1775
        %v1792 = vunpack.c.l.bf16 %v1776
        %v1793 = vunpack.c.l.bf16 %v1777
        %v1794 = vld [vmem:[%s312] sm:$0xf]
        %v1795 = vld [vmem:[%s312 + $0x4] sm:$0xf]
        %v1796 = vld [vmem:[%s312 + $0x8] sm:$0xf]
        %v1797 = vld [vmem:[%s312 + $0xc] sm:$0xf]
        %v1798 = vld [vmem:[%s312 + $0x10] sm:$0xf]
        %v1799 = vld [vmem:[%s312 + $0x14] sm:$0xf]
        %v1800 = vld [vmem:[%s312 + $0x18] sm:$0xf]
        %v1801 = vld [vmem:[%s312 + $0x1c] sm:$0xf]
        %v1802 = vld [vmem:[%s312 + $0x20] sm:$0xf]
        %v1803 = vld [vmem:[%s312 + $0x24] sm:$0xf]
        %v1804 = vld [vmem:[%s312 + $0x28] sm:$0xf]
        %v1805 = vld [vmem:[%s312 + $0x2c] sm:$0xf]
        %v1806 = vld [vmem:[%s312 + $0x30] sm:$0xf]
        %v1807 = vld [vmem:[%s312 + $0x34] sm:$0xf]
        %v1808 = vld [vmem:[%s312 + $0x38] sm:$0xf]
        %v1809 = vld [vmem:[%s312 + $0x3c] sm:$0xf]
        %v1810 = vunpack.c.l.bf16 %v1794
        %v1811 = vunpack.c.l.bf16 %v1795
        %v1812 = vunpack.c.l.bf16 %v1796
        %v1813 = vunpack.c.l.bf16 %v1797
        %v1814 = vunpack.c.l.bf16 %v1798
        %v1815 = vunpack.c.l.bf16 %v1799
        %v1816 = vunpack.c.l.bf16 %v1800
        %v1817 = vunpack.c.l.bf16 %v1801
        %v1818 = vunpack.c.l.bf16 %v1802
        %v1819 = vunpack.c.l.bf16 %v1803
        %v1820 = vunpack.c.l.bf16 %v1804
        %v1821 = vunpack.c.l.bf16 %v1805
        %v1822 = vunpack.c.l.bf16 %v1806
        %v1823 = vunpack.c.l.bf16 %v1807
        %v1824 = vunpack.c.l.bf16 %v1808
        %v1825 = vunpack.c.l.bf16 %v1809
        %v1826 = vmul.f32 %v1810, %v1667
        %v1827 = vmul.f32 %v1811, %v1668
        %v1828 = vmul.f32 %v1812, %v1669
        %v1829 = vmul.f32 %v1813, %v1670
        %v1830 = vmul.f32 %v1814, %v1671
        %v1831 = vmul.f32 %v1815, %v1672
        %v1832 = vmul.f32 %v1816, %v1673
        %v1833 = vmul.f32 %v1817, %v1674
        %v1834 = vmul.f32 %v1818, %v1675
        %v1835 = vmul.f32 %v1819, %v1676
        %v1836 = vmul.f32 %v1820, %v1677
        %v1837 = vmul.f32 %v1821, %v1678
        %v1838 = vmul.f32 %v1822, %v1679
        %v1839 = vmul.f32 %v1823, %v1680
        %v1840 = vmul.f32 %v1824, %v1681
        %v1841 = vmul.f32 %v1825, %v1682
        %v1842 = vadd.f32 %v1778, %v1826
        %v1843 = vadd.f32 %v1779, %v1827
        %v1844 = vadd.f32 %v1780, %v1828
        %v1845 = vadd.f32 %v1781, %v1829
        %v1846 = vadd.f32 %v1782, %v1830
        %v1847 = vadd.f32 %v1783, %v1831
        %v1848 = vadd.f32 %v1784, %v1832
        %v1849 = vadd.f32 %v1785, %v1833
        %v1850 = vadd.f32 %v1786, %v1834
        %v1851 = vadd.f32 %v1787, %v1835
        %v1852 = vadd.f32 %v1788, %v1836
        %v1853 = vadd.f32 %v1789, %v1837
        %v1854 = vadd.f32 %v1790, %v1838
        %v1855 = vadd.f32 %v1791, %v1839
        %v1856 = vadd.f32 %v1792, %v1840
        %v1857 = vadd.f32 %v1793, %v1841
        %v1858 = vld [vmem:[%s357] sm:$0x1]
        %v1859 = vunpack.c.l.bf16 %v1858
        %v1860 = vld [vmem:[%s360] sm:$0x1]
        %v1861 = vunpack.c.l.bf16 %v1860
        %v1862 = vmul.f32 %v1861, %v1761
        %v1863 = vadd.f32 %v1859, %v1862
        %v1864 = vld [vmem:[#allocation2] sm:$0xff]
        %v1865 = vpack.c.bf16 %v1864, %v1864
        %v1866 = vpack.c.bf16 %v1843, %v1842
        %v1867 = vpack.c.bf16 %v1845, %v1844
        %v1868 = vpack.c.bf16 %v1847, %v1846
        %v1869 = vpack.c.bf16 %v1849, %v1848
        %v1870 = vpack.c.bf16 %v1851, %v1850
        %v1871 = vpack.c.bf16 %v1853, %v1852
        %v1872 = vpack.c.bf16 %v1855, %v1854
        %v1873 = vpack.c.bf16 %v1857, %v1856
        %v1874 = vlaneseq
        %v1875 = vshrl.u32 %v1874, 7
        %v1876 = vsub.s32 0, %v1875
        %v1877 = vrot.slane %v1863, %v1876
        %1878 = vmatprep.subr.bf16.mxu0 0
        %1879 = vmatpush1.bf16.msra.mxu0 %v1873
        %1880 = vmatprep.subr.bf16.mxu0 0
        %1881 = vmatpush1.bf16.msra.mxu0 %v1872
        %1882 = vmatprep.subr.bf16.mxu0 0
        %1883 = vmatpush1.bf16.msra.mxu0 %v1871
        %1884 = vmatprep.subr.bf16.mxu0 0
        %1885 = vmatpush1.bf16.msra.mxu0 %v1870
        %1886 = vmatprep.subr.bf16.mxu0 0
        %1887 = vmatpush1.bf16.msra.mxu0 %v1869
        %1888 = vmatprep.subr.bf16.mxu0 0
        %1889 = vmatpush1.bf16.msra.mxu0 %v1868
        %1890 = vmatprep.subr.bf16.mxu0 0
        %1891 = vmatpush1.bf16.msra.mxu0 %v1867
        %1892 = vmatprep.subr.bf16.mxu0 0
        %1893 = vmatpush1.bf16.msra.mxu0 %v1866
        %1894 = vmatprep.subr.bf16.mxu0 0
        %1895 = vmatpush2.bf16.msra.mxu0 0
        %1896 = vmatprep.subr.bf16.mxu0 0
        %1897 = vmatpush2.bf16.msra.mxu0 0
        %1898 = vmatprep.subr.bf16.mxu0 0
        %1899 = vmatpush2.bf16.msra.mxu0 0
        %1900 = vmatprep.subr.bf16.mxu0 0
        %1901 = vmatpush2.bf16.msra.mxu0 0
        %1902 = vmatprep.subr.bf16.mxu0 0
        %1903 = vmatpush2.bf16.msra.mxu0 0
        %1904 = vmatprep.subr.bf16.mxu0 0
        %1905 = vmatpush2.bf16.msra.mxu0 0
        %1906 = vmatprep.subr.bf16.mxu0 0
        %1907 = vmatpush2.bf16.msra.mxu0 0
        %1908 = vmatprep.subr.bf16.mxu0 0
        %1909 = vmatpush2.bf16.msra.mxu0 0
        %1910 = vmatprep.mubr.bf16.mxu0 0
        %1911 = vmatmul.mubr.bf16.gmra.mxu0 %v1865
        %v1912 = vpop.f32.mrf.mxu0
        %v1913 = vadd.f32 %v1877, %v1912
        %v1914 = vpop.f32.mrf.mxu0
        %v1915 = vpop.f32.mrf.mxu0
        %v1916 = vpop.f32.mrf.mxu0
        %1917 = vdwg.mxu0
        %p1918 = scmp.lt.s32.totalorder %s30, 2
        // Predicated region
        $region57: #{tpu_custom_call.1} parent=43 // pred_check
          %p1919 = pneg %p1918
        $region58: #{tpu_custom_call.1} parent=43 // pred_check_branch
          %1921 = sbr.rel (%p1919) target = $region60
        $region59: #{tpu_custom_call.1} parent=43 // pred_region
          %v1922 = vmax.f32 %v1913, 0.0
          %1923 = vst [vmem:[#allocation2] sm:$0xff] %v1922
        $region60: #{tpu_custom_call.1} parent=43 // pred_fallthru
          _
        %p1924 = scmp.eq.s32.totalorder %s30, 2
        // Predicated region
        $region61: #{tpu_custom_call.1} parent=43 // pred_check
          %p1925 = pneg %p1924
        $region62: #{tpu_custom_call.1} parent=43 // pred_check_branch
          %1927 = sbr.rel (%p1925) target = $region64
        $region63: #{tpu_custom_call.1} parent=43 // pred_region
          %1928 = vst [vmem:[#allocation9] sm:$0xff] %v1913
        $region64: #{tpu_custom_call.1} parent=43 // pred_fallthru
          _
        // Predicated region
        $region65: #{tpu_custom_call.1} parent=43 // pred_check
          %p1929 = pneg %p206
        $region66: #{tpu_custom_call.1} parent=43 // pred_check_branch
          %1931 = sbr.rel (%p1929) target = $region68
        $region67: #{tpu_custom_call.1} parent=43 // pred_region
          %s1933 = ssub.s32 128, 128
          %1934 = vsyncadd [#allocation6], %s1933
          %s1935 = smul.addr %s29, 128
          %s1936 = scalar_lea.hbm %s6, %s1935
          %s1938 = sshll.u32 [#allocation9], 4
          %s1939 = int_to_ptr.vmem [resolvable:$true] %s1938
          %1941 = dma.vmem_to_hbm [thread:$0]  %s1939, 128, %s1936, [#allocation6]
        $region68: #{tpu_custom_call.1} parent=43 // pred_fallthru
          _
        // Predicated region
        $region69: #{tpu_custom_call.1} parent=43 // pred_check
          %p1942 = pneg %p206
        $region70: #{tpu_custom_call.1} parent=43 // pred_check_branch
          %1944 = sbr.rel (%p1942) target = $region72
        $region71: #{tpu_custom_call.1} parent=43 // pred_region
          %1945 = dma.done [#allocation6], 128
        $region72: #{tpu_custom_call.1} parent=43 // pred_fallthru
          _
      $region44: #{tpu_custom_call.1} parent=5 // pred_fallthru
        _
      %p1946 = scmp.le.s32.totalorder 2, %s20
      // Predicated region
      $region73: #{tpu_custom_call.1} parent=5 // pred_check
        %p1947 = pneg %p1946
      $region74: #{tpu_custom_call.1} parent=5 // pred_check_branch
        %1949 = sbr.rel (%p1947) target = $region76
      $region75: #{tpu_custom_call.1} parent=5 // pred_region
        %s1950 = ssub.s32 %s20, 2
      $region76: #{tpu_custom_call.1} parent=5 // pred_fallthru
        _
    $region6: #{tpu_custom_call.1} parent=1 // loop_footer
      %s24 = sadd.s32 1, %s20
    $region7: #{tpu_custom_call.1} parent=1 // loop_footer_branch
      %19 = sbr.rel target = $region3
    $region8: #{tpu_custom_call.1} parent=1 // loop_exit
      _
    %1951 = vsyncpa [#allocation5], 1
    %s1952 = scalar_lea.sflag [#allocation5], 1
    %1953 = vsyncpa %s1952, 1
    %1954 = vsyncpa [#allocation8], 1
    %s1955 = scalar_lea.sflag [#allocation8], 1
    %1956 = vsyncpa %s1955, 1
    %1957 = vsyncpa [#allocation6], 1
    %s1958 = scalar_lea.sflag [#allocation6], 1
    %1959 = vsyncpa %s1958, 1

</llo_original>
